<compile_context>
chip_gen: v7x
topology: tpu7x:2x2x1
jax: 0.10.0
libtpu: 0.0.40
codegen_flags: <defaults>
</compile_context>

<pallas_src>
from functools import partial

import numpy as np
import jax
import jax.numpy as jnp
from jax.experimental import pallas as pl
from jax.experimental.pallas import tpu as pltpu

# ---------------------------------------------------------------------------
# Configuration (constructor args of ActorCriticDH, small but consistent)
# ---------------------------------------------------------------------------
BATCH = 2
NUM_SHORT_OBS = 24
NUM_PROPRIO_OBS = 20          # conv spatial length L
NUM_CRITIC_OBS = 48
NUM_ACTIONS = 12
IN_CHANNELS = 16              # conv channels C
ACTOR_HIDDEN = [64, 64, 64]
CRITIC_HIDDEN = [64, 64, 64]
SE_HIDDEN = [64, 32, 32]
KERNEL_SIZE = [6, 4]
FILTER_SIZE = [32, 16]
STRIDE_SIZE = [3, 2]
LH_OUTPUT_DIM = 64

# Derived conv output lengths (same formula as the PyTorch module)
L1 = (NUM_PROPRIO_OBS - KERNEL_SIZE[0] + STRIDE_SIZE[0]) // STRIDE_SIZE[0]   # 5
L2 = (L1 - KERNEL_SIZE[1] + STRIDE_SIZE[1]) // STRIDE_SIZE[1]                # 1
CNN_OUT_DIM = L2 * FILTER_SIZE[1]                                            # 16
OBS_DIM = IN_CHANNELS * NUM_PROPRIO_OBS                                      # 320
ACTOR_IN = NUM_SHORT_OBS + 3 + LH_OUTPUT_DIM                                 # 91
OUT_WIDTH = 128               # lane-dense fused output: [0:12]=mean, [12]=value

RELU_LANES_A = FILTER_SIZE[0] * L1    # 160: conv1 lanes (ReLU); rest ELU (SE l0)
RELU_LANES_B = FILTER_SIZE[1] * L2    # 16 : conv2 lanes (ReLU); rest ELU (SE l1)

# ---------------------------------------------------------------------------
# Packed-parameter layout (weight slab: bf16, width 256; bias slab: f32 8x256)
# ---------------------------------------------------------------------------
_W_ORDER = [
    # fused layer A: [conv1 (im2col) | state-estimator layer 0]
    ("w_a",      (OBS_DIM, 224)),
    # fused layer B: [conv2 (im2col) | state-estimator layer 1]
    ("w_b",      (224, 48)),
    # fused layer C: [lh Linear(16,128) | state-estimator layer 2]
    ("w_c",      (48, 160)),
    # fused layer D (actor l0 + critic l0):
    ("w_d_main", (160, 128)),            # [lh_w2@a_w0_lh ; se_w3@a_w0_es] -> actor cols
    ("w_d_obs",  (OBS_DIM, 128)),        # short-history skip (a_w0_short rows)
    ("w_d_cobs", (NUM_CRITIC_OBS, 128)), # critic obs -> critic cols
    # fused actor/critic hidden layers 1, 2 (block-diagonal) and head
    ("w_e",      (128, 128)),
    ("w_f",      (128, 128)),
    ("w_head",   (128, 128)),
]


def _build_w_layout():
    layout, off = {}, 0
    for name, (rows, cols) in _W_ORDER:
        layout[name] = (off, rows, cols)
        off += -(-rows // 16) * 16        # 16-row align (bf16 sublane packing)
    return layout, off


_W_LAYOUT, W_SLAB_ROWS = _build_w_layout()   # W_SLAB_ROWS == 1504
W_SLAB_WIDTH = 256

_B_LAYOUT = {                 # name -> (row in bias slab, valid width)
    "b_a":    (0, 224),
    "b_b":    (1, 48),
    "b_c":    (2, 160),
    "b_d":    (3, 128),
    "b_e":    (4, 128),
    "b_f":    (5, 128),
    "b_head": (6, 128),
}
B_SLAB_ROWS = 8
B_SLAB_WIDTH = 256


# ---------------------------------------------------------------------------
# Elementwise helpers (f32 path — v5e-friendly; shared by kernel and reference)
# ---------------------------------------------------------------------------
def _elu(x):
    # nn.ELU(alpha=1.0); exp argument clamped so the unselected branch never
    # overflows.
    return jnp.where(x > 0.0, x, jnp.exp(jnp.minimum(x, 0.0)) - 1.0)


def _relu(x):
    return jnp.maximum(x, 0.0)


def _mixed_act(x, relu_lanes):
    # lanes [0, relu_lanes) get ReLU (CNN trunk), the rest get ELU (SE trunk).
    lanes = jax.lax.broadcasted_iota(jnp.int32, x.shape, 1)
    return jnp.where(lanes < relu_lanes, _relu(x), _elu(x))


# ---------------------------------------------------------------------------
# Fused Pallas kernel: 9 dots, every activation a full lane tile
# ---------------------------------------------------------------------------
def _fused_kernel(obs_ref, cobs_ref, w_ref, b_ref, out_ref):
    def get_w(name):
        off, rows, cols = _W_LAYOUT[name]
        return w_ref[off:off + rows, :cols]            # static slice of bf16 slab

    def get_b(name):
        row, width = _B_LAYOUT[name]
        return b_ref[row:row + 1, :width]              # (1, width) f32

    def bdot(x_bf16, name):                            # bf16 operand already
        return jnp.dot(x_bf16, get_w(name), preferred_element_type=jnp.float32)

    def fdot(x_f32, name):                             # f32 activation -> bf16 at MXU
        return jnp.dot(x_f32.astype(jnp.bfloat16), get_w(name),
                       preferred_element_type=jnp.float32)

    obs = obs_ref[...]                                 # (bt, 320) bf16
    cobs = cobs_ref[...]                               # (bt, 48)  bf16

    # Layer A: conv1 (im2col, ReLU) || state-estimator layer 0 (ELU)
    h_a = _mixed_act(bdot(obs, "w_a") + get_b("b_a"), RELU_LANES_A)     # (bt, 224)
    # Layer B: conv2 (ReLU) || state-estimator layer 1 (ELU)
    h_b = _mixed_act(fdot(h_a, "w_b") + get_b("b_b"), RELU_LANES_B)     # (bt, 48)
    # Layer C: lh Linear(16,128) (ELU) || state-estimator layer 2 (ELU)
    h_c = _elu(fdot(h_b, "w_c") + get_b("b_c"))                         # (bt, 160)
    # Layer D: actor layer 0 (lh_w2 / se_w3 composed offline into w_d_main,
    # short-history skip via full-obs-width w_d_obs) || critic layer 0 — ELU.
    h_d = _elu(fdot(h_c, "w_d_main") + bdot(obs, "w_d_obs")
               + bdot(cobs, "w_d_cobs") + get_b("b_d"))                 # (bt, 128)
    # Layers E, F: actor/critic hidden layers 1 and 2 (block-diagonal), ELU.
    h_e = _elu(fdot(h_d, "w_e") + get_b("b_e"))                         # (bt, 128)
    h_f = _elu(fdot(h_e, "w_f") + get_b("b_f"))                         # (bt, 128)
    # Head: cols [0:12] = action mean, col 12 = value, rest zero. One full
    # 128-lane store, no masked vst.
    out = fdot(h_f, "w_head") + get_b("b_head")
    out_ref[...] = out.astype(out_ref.dtype)


# ---------------------------------------------------------------------------
# Parameter setup (PyTorch-style uniform(-1/sqrt(fan_in), ...); weights bf16)
# ---------------------------------------------------------------------------
def conv1d_to_dense_np(w, l_in, stride):
    """Lower a Conv1d weight (C_out, C_in, K) to a dense im2col matmul weight of
    shape (C_in*l_in, C_out*l_out), consistent with PyTorch NCL row-major
    flattening of both input and output. Returns float32 numpy."""
    c_out, c_in, k = w.shape
    l_out = (l_in - k) // stride + 1
    wn = np.asarray(jnp.asarray(w, jnp.float32))
    dense = np.zeros((c_in * l_in, c_out * l_out), np.float32)
    for o in range(c_out):
        for t in range(l_out):
            for kk in range(k):
                rows = np.arange(c_in) * l_in + t * stride + kk
                dense[rows, o * l_out + t] = wn[o, :, kk]
    return dense


def _npf(x):
    return np.asarray(jnp.asarray(x, jnp.float32))


def build_slabs(p):
    """Pack all parameters into one bf16 weight slab + one f32 bias slab,
    performing the offline linear-pair composition and block-diagonal fusion."""
    c1_dense = conv1d_to_dense_np(p["conv1_w"], NUM_PROPRIO_OBS, STRIDE_SIZE[0])  # (320,160)
    c2_dense = conv1d_to_dense_np(p["conv2_w"], L1, STRIDE_SIZE[1])               # (160,16)
    c1_bias = np.repeat(_npf(p["conv1_b"]), L1)                                   # (160,)
    c2_bias = np.repeat(_npf(p["conv2_b"]), L2)                                   # (16,)

    a_w0, a_b0 = _npf(p["a_w0"]), _npf(p["a_b0"])
    a_w0_s = a_w0[:NUM_SHORT_OBS]                         # (24, 64) short-history rows
    a_w0_e = a_w0[NUM_SHORT_OBS:NUM_SHORT_OBS + 3]        # (3, 64)  es_vel rows
    a_w0_l = a_w0[NUM_SHORT_OBS + 3:]                     # (64, 64) long-history rows
    lh_w2, lh_b2 = _npf(p["lh_w2"]), _npf(p["lh_b2"])
    se_w3, se_b3 = _npf(p["se_w3"]), _npf(p["se_b3"])

    # Offline composition of the activation-free linear pairs (f32 math).
    lh_w2a = lh_w2 @ a_w0_l                               # (128, 64)
    se_w3a = se_w3 @ a_w0_e                               # (32, 64)
    b_d_actor = a_b0 + lh_b2 @ a_w0_l + se_b3 @ a_w0_e    # (64,)

    # ---- layer A: [conv1 | SE l0]
    w_a = np.zeros((OBS_DIM, 224), np.float32)
    w_a[:, :160] = c1_dense
    w_a[OBS_DIM - NUM_SHORT_OBS:, 160:224] = _npf(p["se_w0"])
    b_a = np.zeros((224,), np.float32)
    b_a[:160] = c1_bias
    b_a[160:224] = _npf(p["se_b0"])

    # ---- layer B: [conv2 | SE l1]
    w_b = np.zeros((224, 48), np.float32)
    w_b[:160, :16] = c2_dense
    w_b[160:224, 16:48] = _npf(p["se_w1"])
    b_b = np.zeros((48,), np.float32)
    b_b[:16] = c2_bias
    b_b[16:48] = _npf(p["se_b1"])

    # ---- layer C: [lh Linear(16,128) | SE l2]
    w_c = np.zeros((48, 160), np.float32)
    w_c[:16, :128] = _npf(p["lh_w1"])
    w_c[16:48, 128:160] = _npf(p["se_w2"])
    b_c = np.zeros((160,), np.float32)
    b_c[:128] = _npf(p["lh_b1"])
    b_c[128:160] = _npf(p["se_b2"])

    # ---- layer D: actor l0 (composed) || critic l0
    w_d_main = np.zeros((160, 128), np.float32)
    w_d_main[:128, :64] = lh_w2a
    w_d_main[128:160, :64] = se_w3a
    w_d_obs = np.zeros((OBS_DIM, 128), np.float32)        # short-history skip
    w_d_obs[OBS_DIM - NUM_SHORT_OBS:, :64] = a_w0_s
    w_d_cobs = np.zeros((NUM_CRITIC_OBS, 128), np.float32)
    w_d_cobs[:, 64:128] = _npf(p["c_w0"])
    b_d = np.zeros((128,), np.float32)
    b_d[:64] = b_d_actor
    b_d[64:128] = _npf(p["c_b0"])

    # ---- layers E, F: block-diagonal [actor ; critic]
    def blockdiag(aw, cw):
        w = np.zeros((128, 128), np.float32)
        w[:64, :64] = _npf(aw)
        w[64:, 64:] = _npf(cw)
        return w

    w_e = blockdiag(p["a_w1"], p["c_w1"])
    b_e = np.concatenate([_npf(p["a_b1"]), _npf(p["c_b1"])])
    w_f = blockdiag(p["a_w2"], p["c_w2"])
    b_f = np.concatenate([_npf(p["a_b2"]), _npf(p["c_b2"])])

    # ---- head
    w_head = np.zeros((128, 128), np.float32)
    w_head[:64, :NUM_ACTIONS] = _npf(p["a_w3"])
    w_head[64:, NUM_ACTIONS:NUM_ACTIONS + 1] = _npf(p["c_w3"])
    b_head = np.zeros((128,), np.float32)
    b_head[:NUM_ACTIONS] = _npf(p["a_b3"])
    b_head[NUM_ACTIONS] = _npf(p["c_b3"])[0]

    w_parts = {"w_a": w_a, "w_b": w_b, "w_c": w_c, "w_d_main": w_d_main,
               "w_d_obs": w_d_obs, "w_d_cobs": w_d_cobs, "w_e": w_e,
               "w_f": w_f, "w_head": w_head}
    b_parts = {"b_a": b_a, "b_b": b_b, "b_c": b_c, "b_d": b_d,
               "b_e": b_e, "b_f": b_f, "b_head": b_head}

    w_slab = np.zeros((W_SLAB_ROWS, W_SLAB_WIDTH), np.float32)
    for name, (off, rows, cols) in _W_LAYOUT.items():
        part = w_parts[name]
        assert part.shape == (rows, cols), (name, part.shape, (rows, cols))
        w_slab[off:off + rows, :cols] = part
    b_slab = np.zeros((B_SLAB_ROWS, B_SLAB_WIDTH), np.float32)
    for name, (row, width) in _B_LAYOUT.items():
        part = b_parts[name]
        assert part.shape == (width,), (name, part.shape, width)
        b_slab[row, :width] = part

    return jnp.asarray(w_slab).astype(jnp.bfloat16), jnp.asarray(b_slab, jnp.float32)


def init_params(key):
    keys = iter(jax.random.split(key, 20))
    p = {}

    def linear(d_in, d_out):
        kw, kb = jax.random.split(next(keys))
        bound = 1.0 / float(np.sqrt(d_in))
        w = jax.random.uniform(kw, (d_in, d_out), jnp.float32, -bound, bound)
        b = jax.random.uniform(kb, (d_out,), jnp.float32, -bound, bound)
        return w.astype(jnp.bfloat16), b                 # weights bf16, biases f32

    def conv(c_in, c_out, k):
        kw, kb = jax.random.split(next(keys))
        fan = c_in * k
        bound = 1.0 / float(np.sqrt(fan))
        w = jax.random.uniform(kw, (c_out, c_in, k), jnp.float32, -bound, bound)
        b = jax.random.uniform(kb, (c_out,), jnp.float32, -bound, bound)
        return w.astype(jnp.bfloat16), b

    # state estimator: ns -> 64 -> 32 -> 32 -> 3 (ELU between)
    sdims = [NUM_SHORT_OBS] + SE_HIDDEN + [3]
    for i in range(4):
        p[f"se_w{i}"], p[f"se_b{i}"] = linear(sdims[i], sdims[i + 1])

    # long history conv stack + MLP head
    p["conv1_w"], p["conv1_b"] = conv(IN_CHANNELS, FILTER_SIZE[0], KERNEL_SIZE[0])
    p["conv2_w"], p["conv2_b"] = conv(FILTER_SIZE[0], FILTER_SIZE[1], KERNEL_SIZE[1])
    p["lh_w1"], p["lh_b1"] = linear(CNN_OUT_DIM, 128)
    p["lh_w2"], p["lh_b2"] = linear(128, LH_OUTPUT_DIM)

    # actor: (ns + 3 + 64) -> 64 -> 64 -> 64 -> num_actions
    adims = [ACTOR_IN] + ACTOR_HIDDEN + [NUM_ACTIONS]
    for i in range(4):
        p[f"a_w{i}"], p[f"a_b{i}"] = linear(adims[i], adims[i + 1])

    # critic: num_critic_obs -> 64 -> 64 -> 64 -> 1
    cdims = [NUM_CRITIC_OBS] + CRITIC_HIDDEN + [1]
    for i in range(4):
        p[f"c_w{i}"], p[f"c_b{i}"] = linear(cdims[i], cdims[i + 1])

    # std parameter (unused in the deterministic forward path)
    p["std"] = jnp.ones((NUM_ACTIONS,), jnp.float32)

    p["w_slab"], p["b_slab"] = build_slabs(p)
    return p


# ---------------------------------------------------------------------------
# Fused forward wrapper: returns (act_inference(obs), evaluate(critic_obs))
# ---------------------------------------------------------------------------
@partial(jax.jit, static_argnames=("batch_tile",))
def actor_critic_forward(params, observations, critic_observations, batch_tile=512):
    assert batch_tile % 16 == 0
    B = observations.shape[0]
    assert critic_observations.shape[0] == B

    # Inputs are only ever MXU operands -> DMA them as bf16 (half the bytes).
    obs = observations.astype(jnp.bfloat16)
    cobs = critic_observations.astype(jnp.bfloat16)

    # Choose a batch tile that divides the (8-padded) batch so we never make a
    # full-array pad copy of a large observation stream.
    b_pad = -(-B // 8) * 8
    if b_pad <= batch_tile:
        bt = b_pad                                   # single tile == full dims
    else:
        bt = None
        for cand in range(batch_tile, 15, -16):      # 16-row tiles (bf16 packing)
            if b_pad % cand == 0:
                bt = cand
                break
        if bt is None:                               # awkward batch: rare fallback
            bt = batch_tile
            b_pad = pl.cdiv(b_pad, bt) * bt
    if b_pad != B:
        obs = jnp.pad(obs, ((0, b_pad - B), (0, 0)))
        cobs = jnp.pad(cobs, ((0, b_pad - B), (0, 0)))

    grid = (b_pad // bt,)

    fused = pl.pallas_call(
        _fused_kernel,
        out_shape=jax.ShapeDtypeStruct((b_pad, OUT_WIDTH), jnp.float32),
        grid_spec=pltpu.PrefetchScalarGridSpec(
            num_scalar_prefetch=0,
            grid=grid,
            in_specs=[
                pl.BlockSpec((bt, OBS_DIM), lambda i: (i, 0)),
                pl.BlockSpec((bt, NUM_CRITIC_OBS), lambda i: (i, 0)),
                # Weights / biases: constant block index -> loaded once,
                # VMEM-resident across all batch tiles.
                pl.BlockSpec((W_SLAB_ROWS, W_SLAB_WIDTH), lambda i: (0, 0)),
                pl.BlockSpec((B_SLAB_ROWS, B_SLAB_WIDTH), lambda i: (0, 0)),
            ],
            out_specs=pl.BlockSpec((bt, OUT_WIDTH), lambda i: (i, 0)),
        ),
        compiler_params=pltpu.CompilerParams(
            dimension_semantics=("parallel",),
        ),
    )(obs, cobs, params["w_slab"], params["b_slab"])

    actions_mean = fused[:B, :NUM_ACTIONS]
    value = fused[:B, NUM_ACTIONS:NUM_ACTIONS + 1]
    return actions_mean, value


# ---------------------------------------------------------------------------
# Pure-JAX reference (mirrors the PyTorch module structure; same bf16 weights
# and bf16-at-matmul-operand / f32-accumulate numerics; the kernel additionally
# composes the activation-free linear pairs offline, hence the tolerance)
# ---------------------------------------------------------------------------
def _bf(x):
    return x.astype(jnp.bfloat16)


def _ref_dot(x, w):
    return jnp.dot(_bf(x), w, preferred_element_type=jnp.float32)


def reference_forward(p, obs, cobs):
    short = obs[:, OBS_DIM - NUM_SHORT_OBS:]

    # state estimator
    h = short
    for i in range(3):
        h = _elu(_ref_dot(h, p[f"se_w{i}"]) + p[f"se_b{i}"])
    es_vel = _ref_dot(h, p["se_w3"]) + p["se_b3"]

    # long-history CNN (real Conv1d, VALID, NCL layout)
    x = obs.reshape(-1, IN_CHANNELS, NUM_PROPRIO_OBS)
    y = jax.lax.conv_general_dilated(
        _bf(x), p["conv1_w"], (STRIDE_SIZE[0],), "VALID",
        dimension_numbers=("NCH", "OIH", "NCH"),
        preferred_element_type=jnp.float32)
    y = jnp.maximum(y + p["conv1_b"][None, :, None], 0.0)
    y = jax.lax.conv_general_dilated(
        _bf(y), p["conv2_w"], (STRIDE_SIZE[1],), "VALID",
        dimension_numbers=("NCH", "OIH", "NCH"),
        preferred_element_type=jnp.float32)
    y = jnp.maximum(y + p["conv2_b"][None, :, None], 0.0)
    y = y.reshape(y.shape[0], -1)
    y = _elu(_ref_dot(y, p["lh_w1"]) + p["lh_b1"])
    lh = _ref_dot(y, p["lh_w2"]) + p["lh_b2"]

    # actor
    a = jnp.concatenate([short, es_vel, lh], axis=-1)
    a = _elu(_ref_dot(a, p["a_w0"]) + p["a_b0"])
    a = _elu(_ref_dot(a, p["a_w1"]) + p["a_b1"])
    a = _elu(_ref_dot(a, p["a_w2"]) + p["a_b2"])
    actions_mean = _ref_dot(a, p["a_w3"]) + p["a_b3"]

    # critic
    v = cobs
    for i in range(3):
        v = _elu(_ref_dot(v, p[f"c_w{i}"]) + p[f"c_b{i}"])
    value = _ref_dot(v, p["c_w3"]) + p["c_b3"]
    return actions_mean, value


# ---------------------------------------------------------------------------
if __name__ == "__main__":
    key = jax.random.PRNGKey(0)
    kp, ko, kc = jax.random.split(key, 3)
    params = init_params(kp)
    observations = jax.random.normal(ko, (BATCH, OBS_DIM), jnp.float32)
    critic_obs = jax.random.normal(kc, (BATCH, NUM_CRITIC_OBS), jnp.float32)

    actions_mean, value = actor_critic_forward(params, observations, critic_obs)
    actions_mean = jax.block_until_ready(actions_mean)
    value = jax.block_until_ready(value)

    assert actions_mean.shape == (BATCH, NUM_ACTIONS)
    assert value.shape == (BATCH, 1)
    assert np.all(np.isfinite(np.asarray(actions_mean)))
    assert np.all(np.isfinite(np.asarray(value)))

    ref_actions, ref_value = reference_forward(params, observations, critic_obs)
    np.testing.assert_allclose(np.asarray(actions_mean), np.asarray(ref_actions),
                               rtol=2e-2, atol=1e-2)
    np.testing.assert_allclose(np.asarray(value), np.asarray(ref_value),
                               rtol=2e-2, atol=1e-2)

    print("KERNEL_OK")
</pallas_src>

<mosaic_0001>
module attributes {stable_mosaic.version = 11 : i64} {
  func.func @_fused_kernel(%arg0: i32, %arg1: memref<8x320xbf16, #tpu.memory_space<vmem>>, %arg2: memref<8x48xbf16, #tpu.memory_space<vmem>>, %arg3: memref<1504x256xbf16, #tpu.memory_space<vmem>>, %arg4: memref<8x256xf32, #tpu.memory_space<vmem>>, %arg5: memref<8x128xf32, #tpu.memory_space<vmem>>) attributes {dimension_semantics = [#tpu.dimension_semantics<parallel>], iteration_bounds = array<i64: 1>, scalar_prefetch = 0 : i64, scratch_operands = 0 : i64, tpu.core_type = #tpu.core_type<tc>, window_params = [{transform_indices = @transform_0, window_bounds = array<i64: 8, 320>}, {transform_indices = @transform_1, window_bounds = array<i64: 8, 48>}, {pipeline_mode = #tpu.pipeline_mode<synchronous>, transform_indices = @transform_2, window_bounds = array<i64: 1504, 256>}, {pipeline_mode = #tpu.pipeline_mode<synchronous>, transform_indices = @transform_3, window_bounds = array<i64: 8, 256>}, {transform_indices = @transform_4, window_bounds = array<i64: 8, 128>}]} {
    %c0 = arith.constant 0 : index
    %c0_0 = arith.constant 0 : index
    %0 = vector.load %arg1[%c0, %c0_0] : memref<8x320xbf16, #tpu.memory_space<vmem>>, vector<8x320xbf16>
    %c0_1 = arith.constant 0 : index
    %c0_2 = arith.constant 0 : index
    %1 = vector.load %arg2[%c0_1, %c0_2] : memref<8x48xbf16, #tpu.memory_space<vmem>>, vector<8x48xbf16>
    %c0_3 = arith.constant 0 : index
    %c0_4 = arith.constant 0 : index
    %2 = vector.load %arg3[%c0_3, %c0_4] : memref<1504x256xbf16, #tpu.memory_space<vmem>>, vector<320x224xbf16>
    %cst = arith.constant dense<0.000000e+00> : vector<8x224xf32>
    %3 = tpu.matmul %0, %2, %cst {dimension_numbers = #tpu.dot_dimension_numbers<[1], [0], [0], [1], [0, 0, 1, 1], [], []>} : vector<8x320xbf16>, vector<320x224xbf16>, vector<8x224xf32> -> vector<8x224xf32>
    %c0_5 = arith.constant 0 : index
    %c0_6 = arith.constant 0 : index
    %4 = vector.load %arg4[%c0_5, %c0_6] : memref<8x256xf32, #tpu.memory_space<vmem>>, vector<1x224xf32>
    %5 = vector.broadcast %4 : vector<1x224xf32> to vector<8x224xf32>
    %6 = arith.addf %3, %5 : vector<8x224xf32>
    %7 = tpu.iota {dimensions = array<i32: 1>} : vector<8x224xi32>
    %c160_i32 = arith.constant 160 : i32
    %8 = vector.broadcast %c160_i32 : i32 to vector<8x224xi32>
    %9 = arith.cmpi slt, %7, %8 : vector<8x224xi32>
    %cst_7 = arith.constant 0.000000e+00 : f32
    %10 = vector.broadcast %cst_7 : f32 to vector<8x224xf32>
    %11 = arith.maximumf %6, %10 : vector<8x224xf32>
    %cst_8 = arith.constant 0.000000e+00 : f32
    %12 = vector.broadcast %cst_8 : f32 to vector<8x224xf32>
    %13 = arith.cmpf ogt, %6, %12 : vector<8x224xf32>
    %cst_9 = arith.constant 0.000000e+00 : f32
    %14 = vector.broadcast %cst_9 : f32 to vector<8x224xf32>
    %15 = arith.minimumf %6, %14 : vector<8x224xf32>
    %16 = math.exp %15 : vector<8x224xf32>
    %cst_10 = arith.constant 1.000000e+00 : f32
    %17 = vector.broadcast %cst_10 : f32 to vector<8x224xf32>
    %18 = arith.subf %16, %17 : vector<8x224xf32>
    %19 = arith.select %13, %6, %18 : vector<8x224xi1>, vector<8x224xf32>
    %20 = arith.select %9, %11, %19 : vector<8x224xi1>, vector<8x224xf32>
    %21 = arith.truncf %20 : vector<8x224xf32> to vector<8x224xbf16>
    %c320 = arith.constant 320 : index
    %c0_11 = arith.constant 0 : index
    %22 = vector.load %arg3[%c320, %c0_11] : memref<1504x256xbf16, #tpu.memory_space<vmem>>, vector<224x48xbf16>
    %cst_12 = arith.constant dense<0.000000e+00> : vector<8x48xf32>
    %23 = tpu.matmul %21, %22, %cst_12 {dimension_numbers = #tpu.dot_dimension_numbers<[1], [0], [0], [1], [0, 0, 1, 1], [], []>} : vector<8x224xbf16>, vector<224x48xbf16>, vector<8x48xf32> -> vector<8x48xf32>
    %c1 = arith.constant 1 : index
    %c0_13 = arith.constant 0 : index
    %24 = vector.load %arg4[%c1, %c0_13] : memref<8x256xf32, #tpu.memory_space<vmem>>, vector<1x48xf32>
    %25 = vector.broadcast %24 : vector<1x48xf32> to vector<8x48xf32>
    %26 = arith.addf %23, %25 : vector<8x48xf32>
    %27 = tpu.iota {dimensions = array<i32: 1>} : vector<8x48xi32>
    %c16_i32 = arith.constant 16 : i32
    %28 = vector.broadcast %c16_i32 : i32 to vector<8x48xi32>
    %29 = arith.cmpi slt, %27, %28 : vector<8x48xi32>
    %cst_14 = arith.constant 0.000000e+00 : f32
    %30 = vector.broadcast %cst_14 : f32 to vector<8x48xf32>
    %31 = arith.maximumf %26, %30 : vector<8x48xf32>
    %cst_15 = arith.constant 0.000000e+00 : f32
    %32 = vector.broadcast %cst_15 : f32 to vector<8x48xf32>
    %33 = arith.cmpf ogt, %26, %32 : vector<8x48xf32>
    %cst_16 = arith.constant 0.000000e+00 : f32
    %34 = vector.broadcast %cst_16 : f32 to vector<8x48xf32>
    %35 = arith.minimumf %26, %34 : vector<8x48xf32>
    %36 = math.exp %35 : vector<8x48xf32>
    %cst_17 = arith.constant 1.000000e+00 : f32
    %37 = vector.broadcast %cst_17 : f32 to vector<8x48xf32>
    %38 = arith.subf %36, %37 : vector<8x48xf32>
    %39 = arith.select %33, %26, %38 : vector<8x48xi1>, vector<8x48xf32>
    %40 = arith.select %29, %31, %39 : vector<8x48xi1>, vector<8x48xf32>
    %41 = arith.truncf %40 : vector<8x48xf32> to vector<8x48xbf16>
    %c544 = arith.constant 544 : index
    %c0_18 = arith.constant 0 : index
    %42 = vector.load %arg3[%c544, %c0_18] : memref<1504x256xbf16, #tpu.memory_space<vmem>>, vector<48x160xbf16>
    %cst_19 = arith.constant dense<0.000000e+00> : vector<8x160xf32>
    %43 = tpu.matmul %41, %42, %cst_19 {dimension_numbers = #tpu.dot_dimension_numbers<[1], [0], [0], [1], [0, 0, 1, 1], [], []>} : vector<8x48xbf16>, vector<48x160xbf16>, vector<8x160xf32> -> vector<8x160xf32>
    %c2 = arith.constant 2 : index
    %c0_20 = arith.constant 0 : index
    %44 = vector.load %arg4[%c2, %c0_20] : memref<8x256xf32, #tpu.memory_space<vmem>>, vector<1x160xf32>
    %45 = vector.broadcast %44 : vector<1x160xf32> to vector<8x160xf32>
    %46 = arith.addf %43, %45 : vector<8x160xf32>
    %cst_21 = arith.constant 0.000000e+00 : f32
    %47 = vector.broadcast %cst_21 : f32 to vector<8x160xf32>
    %48 = arith.cmpf ogt, %46, %47 : vector<8x160xf32>
    %cst_22 = arith.constant 0.000000e+00 : f32
    %49 = vector.broadcast %cst_22 : f32 to vector<8x160xf32>
    %50 = arith.minimumf %46, %49 : vector<8x160xf32>
    %51 = math.exp %50 : vector<8x160xf32>
    %cst_23 = arith.constant 1.000000e+00 : f32
    %52 = vector.broadcast %cst_23 : f32 to vector<8x160xf32>
    %53 = arith.subf %51, %52 : vector<8x160xf32>
    %54 = arith.select %48, %46, %53 : vector<8x160xi1>, vector<8x160xf32>
    %55 = arith.truncf %54 : vector<8x160xf32> to vector<8x160xbf16>
    %c592 = arith.constant 592 : index
    %c0_24 = arith.constant 0 : index
    %56 = vector.load %arg3[%c592, %c0_24] : memref<1504x256xbf16, #tpu.memory_space<vmem>>, vector<160x128xbf16>
    %cst_25 = arith.constant dense<0.000000e+00> : vector<8x128xf32>
    %57 = tpu.matmul %55, %56, %cst_25 {dimension_numbers = #tpu.dot_dimension_numbers<[1], [0], [0], [1], [0, 0, 1, 1], [], []>} : vector<8x160xbf16>, vector<160x128xbf16>, vector<8x128xf32> -> vector<8x128xf32>
    %c752 = arith.constant 752 : index
    %c0_26 = arith.constant 0 : index
    %58 = vector.load %arg3[%c752, %c0_26] : memref<1504x256xbf16, #tpu.memory_space<vmem>>, vector<320x128xbf16>
    %cst_27 = arith.constant dense<0.000000e+00> : vector<8x128xf32>
    %59 = tpu.matmul %0, %58, %cst_27 {dimension_numbers = #tpu.dot_dimension_numbers<[1], [0], [0], [1], [0, 0, 1, 1], [], []>} : vector<8x320xbf16>, vector<320x128xbf16>, vector<8x128xf32> -> vector<8x128xf32>
    %60 = arith.addf %57, %59 : vector<8x128xf32>
    %c1072 = arith.constant 1072 : index
    %c0_28 = arith.constant 0 : index
    %61 = vector.load %arg3[%c1072, %c0_28] : memref<1504x256xbf16, #tpu.memory_space<vmem>>, vector<48x128xbf16>
    %cst_29 = arith.constant dense<0.000000e+00> : vector<8x128xf32>
    %62 = tpu.matmul %1, %61, %cst_29 {dimension_numbers = #tpu.dot_dimension_numbers<[1], [0], [0], [1], [0, 0, 1, 1], [], []>} : vector<8x48xbf16>, vector<48x128xbf16>, vector<8x128xf32> -> vector<8x128xf32>
    %63 = arith.addf %60, %62 : vector<8x128xf32>
    %c3 = arith.constant 3 : index
    %c0_30 = arith.constant 0 : index
    %64 = vector.load %arg4[%c3, %c0_30] : memref<8x256xf32, #tpu.memory_space<vmem>>, vector<1x128xf32>
    %65 = vector.broadcast %64 : vector<1x128xf32> to vector<8x128xf32>
    %66 = arith.addf %63, %65 : vector<8x128xf32>
    %cst_31 = arith.constant 0.000000e+00 : f32
    %67 = vector.broadcast %cst_31 : f32 to vector<8x128xf32>
    %68 = arith.cmpf ogt, %66, %67 : vector<8x128xf32>
    %cst_32 = arith.constant 0.000000e+00 : f32
    %69 = vector.broadcast %cst_32 : f32 to vector<8x128xf32>
    %70 = arith.minimumf %66, %69 : vector<8x128xf32>
    %71 = math.exp %70 : vector<8x128xf32>
    %cst_33 = arith.constant 1.000000e+00 : f32
    %72 = vector.broadcast %cst_33 : f32 to vector<8x128xf32>
    %73 = arith.subf %71, %72 : vector<8x128xf32>
    %74 = arith.select %68, %66, %73 : vector<8x128xi1>, vector<8x128xf32>
    %75 = arith.truncf %74 : vector<8x128xf32> to vector<8x128xbf16>
    %c1120 = arith.constant 1120 : index
    %c0_34 = arith.constant 0 : index
    %76 = vector.load %arg3[%c1120, %c0_34] : memref<1504x256xbf16, #tpu.memory_space<vmem>>, vector<128x128xbf16>
    %cst_35 = arith.constant dense<0.000000e+00> : vector<8x128xf32>
    %77 = tpu.matmul %75, %76, %cst_35 {dimension_numbers = #tpu.dot_dimension_numbers<[1], [0], [0], [1], [0, 0, 1, 1], [], []>} : vector<8x128xbf16>, vector<128x128xbf16>, vector<8x128xf32> -> vector<8x128xf32>
    %c4 = arith.constant 4 : index
    %c0_36 = arith.constant 0 : index
    %78 = vector.load %arg4[%c4, %c0_36] : memref<8x256xf32, #tpu.memory_space<vmem>>, vector<1x128xf32>
    %79 = vector.broadcast %78 : vector<1x128xf32> to vector<8x128xf32>
    %80 = arith.addf %77, %79 : vector<8x128xf32>
    %cst_37 = arith.constant 0.000000e+00 : f32
    %81 = vector.broadcast %cst_37 : f32 to vector<8x128xf32>
    %82 = arith.cmpf ogt, %80, %81 : vector<8x128xf32>
    %cst_38 = arith.constant 0.000000e+00 : f32
    %83 = vector.broadcast %cst_38 : f32 to vector<8x128xf32>
    %84 = arith.minimumf %80, %83 : vector<8x128xf32>
    %85 = math.exp %84 : vector<8x128xf32>
    %cst_39 = arith.constant 1.000000e+00 : f32
    %86 = vector.broadcast %cst_39 : f32 to vector<8x128xf32>
    %87 = arith.subf %85, %86 : vector<8x128xf32>
    %88 = arith.select %82, %80, %87 : vector<8x128xi1>, vector<8x128xf32>
    %89 = arith.truncf %88 : vector<8x128xf32> to vector<8x128xbf16>
    %c1248 = arith.constant 1248 : index
    %c0_40 = arith.constant 0 : index
    %90 = vector.load %arg3[%c1248, %c0_40] : memref<1504x256xbf16, #tpu.memory_space<vmem>>, vector<128x128xbf16>
    %cst_41 = arith.constant dense<0.000000e+00> : vector<8x128xf32>
    %91 = tpu.matmul %89, %90, %cst_41 {dimension_numbers = #tpu.dot_dimension_numbers<[1], [0], [0], [1], [0, 0, 1, 1], [], []>} : vector<8x128xbf16>, vector<128x128xbf16>, vector<8x128xf32> -> vector<8x128xf32>
    %c5 = arith.constant 5 : index
    %c0_42 = arith.constant 0 : index
    %92 = vector.load %arg4[%c5, %c0_42] : memref<8x256xf32, #tpu.memory_space<vmem>>, vector<1x128xf32>
    %93 = vector.broadcast %92 : vector<1x128xf32> to vector<8x128xf32>
    %94 = arith.addf %91, %93 : vector<8x128xf32>
    %cst_43 = arith.constant 0.000000e+00 : f32
    %95 = vector.broadcast %cst_43 : f32 to vector<8x128xf32>
    %96 = arith.cmpf ogt, %94, %95 : vector<8x128xf32>
    %cst_44 = arith.constant 0.000000e+00 : f32
    %97 = vector.broadcast %cst_44 : f32 to vector<8x128xf32>
    %98 = arith.minimumf %94, %97 : vector<8x128xf32>
    %99 = math.exp %98 : vector<8x128xf32>
    %cst_45 = arith.constant 1.000000e+00 : f32
    %100 = vector.broadcast %cst_45 : f32 to vector<8x128xf32>
    %101 = arith.subf %99, %100 : vector<8x128xf32>
    %102 = arith.select %96, %94, %101 : vector<8x128xi1>, vector<8x128xf32>
    %103 = arith.truncf %102 : vector<8x128xf32> to vector<8x128xbf16>
    %c1376 = arith.constant 1376 : index
    %c0_46 = arith.constant 0 : index
    %104 = vector.load %arg3[%c1376, %c0_46] : memref<1504x256xbf16, #tpu.memory_space<vmem>>, vector<128x128xbf16>
    %cst_47 = arith.constant dense<0.000000e+00> : vector<8x128xf32>
    %105 = tpu.matmul %103, %104, %cst_47 {dimension_numbers = #tpu.dot_dimension_numbers<[1], [0], [0], [1], [0, 0, 1, 1], [], []>} : vector<8x128xbf16>, vector<128x128xbf16>, vector<8x128xf32> -> vector<8x128xf32>
    %c6 = arith.constant 6 : index
    %c0_48 = arith.constant 0 : index
    %106 = vector.load %arg4[%c6, %c0_48] : memref<8x256xf32, #tpu.memory_space<vmem>>, vector<1x128xf32>
    %107 = vector.broadcast %106 : vector<1x128xf32> to vector<8x128xf32>
    %108 = arith.addf %105, %107 : vector<8x128xf32>
    %c0_49 = arith.constant 0 : index
    %c0_50 = arith.constant 0 : index
    %109 = vector.load %arg5[%c0_49, %c0_50] : memref<8x128xf32, #tpu.memory_space<vmem>>, vector<8x128xf32>
    tpu.vector_store %arg5[%c0_49, %c0_50], %108 {strides = array<i32>} : memref<8x128xf32, #tpu.memory_space<vmem>>, vector<8x128xf32>,
    return
  }
  func.func @transform_0(%arg0: i32) -> (i32, i32) {
    %c0_i32 = arith.constant 0 : i32
    %c0_i32_0 = arith.constant 0 : i32
    return %arg0, %c0_i32 : i32, i32
  }
  func.func @transform_1(%arg0: i32) -> (i32, i32) {
    %c0_i32 = arith.constant 0 : i32
    %c0_i32_0 = arith.constant 0 : i32
    return %arg0, %c0_i32 : i32, i32
  }
  func.func @transform_2(%arg0: i32) -> (i32, i32) {
    %c0_i32 = arith.constant 0 : i32
    %c0_i32_0 = arith.constant 0 : i32
    %c0_i32_1 = arith.constant 0 : i32
    return %c0_i32, %c0_i32_0 : i32, i32
  }
  func.func @transform_3(%arg0: i32) -> (i32, i32) {
    %c0_i32 = arith.constant 0 : i32
    %c0_i32_0 = arith.constant 0 : i32
    %c0_i32_1 = arith.constant 0 : i32
    return %c0_i32, %c0_i32_0 : i32, i32
  }
  func.func @transform_4(%arg0: i32) -> (i32, i32) {
    %c0_i32 = arith.constant 0 : i32
    %c0_i32_0 = arith.constant 0 : i32
    return %arg0, %c0_i32 : i32, i32
  }
}

</mosaic_0001>

<llo_original>
// kernel: actor_critic_forward.1
$region0: #{actor_critic_forward.1}
  #allocation0 [shape = 'u32[]', space=smem, size = 0x4, offset = 0x4, fixed_abs, tag = 'smem constant byte address 0x4 - core index']
  #allocation1 [shape = 'u32[144,128]{1,0:T(1,128)}', space=vmem, size = 0x12000, scoped, tag = 'internal scratch']
  %s0 = inlined_call_operand.vmem [shape: bf16[8,320], index: 0, kind: input, shape index: {}]
  %s1 = inlined_call_operand.vmem [shape: bf16[8,48], index: 1, kind: input, shape index: {}]
  %s2 = inlined_call_operand.hbm [shape: bf16[1504,256], index: 2, kind: input, shape index: {}]
  %s3 = inlined_call_operand.vmem [shape: f32[8,256], index: 3, kind: input, shape index: {}]
  %s4 = inlined_call_operand.vmem [shape: f32[8,128], index: 4, kind: output, shape index: {}]
  %s5 = sld [smem:[#allocation0]]
  $region30: #{actor_critic_forward.1} parent=0
    _
  %s7 = ssub.s32 1, %s5
  %s8 = scalar_select 0, %s7, %s5
  $region1: #{actor_critic_forward.1} parent=0
    #allocation2 [shape = 'u8[770048]{0}', space=vmem, size = 0xbc000, scoped, tag = 'input window, operand 2, single buffered']
    #allocation3 [shape = 's32[1]{0}', space=sflag, size = 0x4, scoped, tag = 'scoped memory for actor_critic_forward.1']
    %9 = vsyncpa [#allocation3], 0
    // Predicated region
    $region2: #{actor_critic_forward.1} parent=1 // pred_check
      _
    $region3: #{actor_critic_forward.1} parent=1 // pred_check_branch
      %11 = sbr.rel (0) target = $region5
    $region4: #{actor_critic_forward.1} parent=1 // pred_region
      _
    $region5: #{actor_critic_forward.1} parent=1 // pred_fallthru
      _
    // Predicated region
    $region6: #{actor_critic_forward.1} parent=1 // pred_check
      _
    $region7: #{actor_critic_forward.1} parent=1 // pred_check_branch
      %13 = sbr.rel (0) target = $region9
    $region8: #{actor_critic_forward.1} parent=1 // pred_region
      _
    $region9: #{actor_critic_forward.1} parent=1 // pred_fallthru
      _
    // Predicated region
    $region10: #{actor_critic_forward.1} parent=1 // pred_check
      _
    $region11: #{actor_critic_forward.1} parent=1 // pred_check_branch
      %15 = sbr.rel (0) target = $region13
    $region12: #{actor_critic_forward.1} parent=1 // pred_region
      %s17 = ssub.s32 24064, 24064
      %18 = vsyncadd [#allocation3], %s17
      %s19 = sshll.u32 [#allocation2], 4
      %s20 = int_to_ptr.vmem [resolvable:$true] %s19
      %25 = dma.hbm_to_vmem [thread:$0]  %s2, 24064, %s20, [#allocation3], 128, 128, 8
    $region13: #{actor_critic_forward.1} parent=1 // pred_fallthru
      _
    // Predicated region
    $region14: #{actor_critic_forward.1} parent=1 // pred_check
      _
    $region15: #{actor_critic_forward.1} parent=1 // pred_check_branch
      %27 = sbr.rel (0) target = $region17
    $region16: #{actor_critic_forward.1} parent=1 // pred_region
      _
    $region17: #{actor_critic_forward.1} parent=1 // pred_fallthru
      _
    // Predicated region
    $region18: #{actor_critic_forward.1} parent=1 // pred_check
      _
    $region19: #{actor_critic_forward.1} parent=1 // pred_check_branch
      %29 = sbr.rel (0) target = $region21
    $region20: #{actor_critic_forward.1} parent=1 // pred_region
      %30 = dma.done [#allocation3], 24064
    $region21: #{actor_critic_forward.1} parent=1 // pred_fallthru
      _
    %v32 = vld [vmem:[%s0] sm:$0xff]
    %v33 = vld [vmem:[%s0 + $0x8] sm:$0xf]
    %v34 = vld [vmem:[%s1] sm:$0xf]
    %v35 = vld [vmem:[#allocation2] sm:$0xff]
    %v36 = vld [vmem:[#allocation2 + $0x8] sm:$0xff]
    %v37 = vld [vmem:[#allocation2 + $0x10] sm:$0xff]
    %v38 = vld [vmem:[#allocation2 + $0x18] sm:$0xff]
    %v39 = vld [vmem:[#allocation2 + $0x20] sm:$0xff]
    %v40 = vld [vmem:[#allocation2 + $0x28] sm:$0xff]
    %v41 = vld [vmem:[#allocation2 + $0x30] sm:$0xff]
    %v42 = vld [vmem:[#allocation2 + $0x38] sm:$0xff]
    %v43 = vld [vmem:[#allocation2 + $0x40] sm:$0xff]
    %v44 = vld [vmem:[#allocation2 + $0x48] sm:$0xff]
    %v45 = vld [vmem:[#allocation2 + $0x50] sm:$0xff]
    %v46 = vld [vmem:[#allocation2 + $0x58] sm:$0xff]
    %v47 = vld [vmem:[#allocation2 + $0x60] sm:$0xff]
    %v48 = vld [vmem:[#allocation2 + $0x68] sm:$0xff]
    %v49 = vld [vmem:[#allocation2 + $0x70] sm:$0xff]
    %v50 = vld [vmem:[#allocation2 + $0x78] sm:$0xff]
    %v51 = vld [vmem:[#allocation2 + $0x80] sm:$0xff]
    %v52 = vld [vmem:[#allocation2 + $0x88] sm:$0xff]
    %v53 = vld [vmem:[#allocation2 + $0x90] sm:$0xff]
    %v54 = vld [vmem:[#allocation2 + $0x98] sm:$0xff]
    %v55 = vld [vmem:[#allocation2 + $0xa0] sm:$0xff]
    %v56 = vld [vmem:[#allocation2 + $0xa8] sm:$0xff]
    %v57 = vld [vmem:[#allocation2 + $0xb0] sm:$0xff]
    %v58 = vld [vmem:[#allocation2 + $0xb8] sm:$0xff]
    %v59 = vld [vmem:[#allocation2 + $0xc0] sm:$0xff]
    %v60 = vld [vmem:[#allocation2 + $0xc8] sm:$0xff]
    %v61 = vld [vmem:[#allocation2 + $0xd0] sm:$0xff]
    %v62 = vld [vmem:[#allocation2 + $0xd8] sm:$0xff]
    %v63 = vld [vmem:[#allocation2 + $0xe0] sm:$0xff]
    %v64 = vld [vmem:[#allocation2 + $0xe8] sm:$0xff]
    %v65 = vld [vmem:[#allocation2 + $0xf0] sm:$0xff]
    %v66 = vld [vmem:[#allocation2 + $0xf8] sm:$0xff]
    %v67 = vld [vmem:[#allocation2 + $0x100] sm:$0xff]
    %v68 = vld [vmem:[#allocation2 + $0x108] sm:$0xff]
    %v69 = vld [vmem:[#allocation2 + $0x110] sm:$0xff]
    %v70 = vld [vmem:[#allocation2 + $0x118] sm:$0xff]
    %v71 = vld [vmem:[#allocation2 + $0x120] sm:$0xff]
    %v72 = vld [vmem:[#allocation2 + $0x128] sm:$0xff]
    %v73 = vld [vmem:[#allocation2 + $0x130] sm:$0xff]
    %v74 = vld [vmem:[#allocation2 + $0x138] sm:$0xff]
    %v75 = vld [vmem:[%s3] ss:$8 sm:$0x3]
    %v77 = vlaneseq
    %v78 = vshrl.u32 %v77, 7
    %v79 = vsub.s32 0, %v78
    %v80 = vrot.slane %v75, %v79
    %v81 = vlaneseq
    %v82 = vshrl.u32 %v81, 7
    %v83 = vsub.s32 1, %v82
    %v84 = vrot.slane %v75, %v83
    %v89 = vunpack.c.l.b16 %v32
    %v90 = vunpack.c.h.b16 %v32
    %v91 = vunpack.c.l.b16 %v33
    %v92 = vpack.c.b16 %v89, %v89
    %v93 = vpack.c.b16 %v90, %v90
    %v94 = vpack.c.b16 %v91, %v91
    %v137 = vunpack.c.l.b16 %v35
    %v138 = vunpack.c.h.b16 %v35
    %v139 = vunpack.c.l.b16 %v36
    %v140 = vunpack.c.h.b16 %v36
    %v141 = vunpack.c.l.b16 %v37
    %v142 = vunpack.c.h.b16 %v37
    %v143 = vunpack.c.l.b16 %v38
    %v144 = vunpack.c.h.b16 %v38
    %v145 = vunpack.c.l.b16 %v39
    %v146 = vunpack.c.h.b16 %v39
    %v147 = vunpack.c.l.b16 %v40
    %v148 = vunpack.c.h.b16 %v40
    %v149 = vunpack.c.l.b16 %v41
    %v150 = vunpack.c.h.b16 %v41
    %v151 = vunpack.c.l.b16 %v42
    %v152 = vunpack.c.h.b16 %v42
    %v153 = vunpack.c.l.b16 %v43
    %v154 = vunpack.c.h.b16 %v43
    %v155 = vunpack.c.l.b16 %v44
    %v156 = vunpack.c.h.b16 %v44
    %v157 = vunpack.c.l.b16 %v45
    %v158 = vunpack.c.h.b16 %v45
    %v159 = vunpack.c.l.b16 %v46
    %v160 = vunpack.c.h.b16 %v46
    %v161 = vunpack.c.l.b16 %v47
    %v162 = vunpack.c.h.b16 %v47
    %v163 = vunpack.c.l.b16 %v48
    %v164 = vunpack.c.h.b16 %v48
    %v165 = vunpack.c.l.b16 %v49
    %v166 = vunpack.c.h.b16 %v49
    %v167 = vunpack.c.l.b16 %v50
    %v168 = vunpack.c.h.b16 %v50
    %v169 = vunpack.c.l.b16 %v51
    %v170 = vunpack.c.h.b16 %v51
    %v171 = vunpack.c.l.b16 %v52
    %v172 = vunpack.c.h.b16 %v52
    %v173 = vunpack.c.l.b16 %v53
    %v174 = vunpack.c.h.b16 %v53
    %v175 = vunpack.c.l.b16 %v54
    %v176 = vunpack.c.h.b16 %v54
    %v177 = vunpack.c.l.b16 %v55
    %v178 = vunpack.c.h.b16 %v55
    %v179 = vunpack.c.l.b16 %v56
    %v180 = vunpack.c.h.b16 %v56
    %v181 = vunpack.c.l.b16 %v57
    %v182 = vunpack.c.h.b16 %v57
    %v183 = vunpack.c.l.b16 %v58
    %v184 = vunpack.c.h.b16 %v58
    %v185 = vunpack.c.l.b16 %v59
    %v186 = vunpack.c.h.b16 %v59
    %v187 = vunpack.c.l.b16 %v60
    %v188 = vunpack.c.h.b16 %v60
    %v189 = vunpack.c.l.b16 %v61
    %v190 = vunpack.c.h.b16 %v61
    %v191 = vunpack.c.l.b16 %v62
    %v192 = vunpack.c.h.b16 %v62
    %v193 = vunpack.c.l.b16 %v63
    %v194 = vunpack.c.h.b16 %v63
    %v195 = vunpack.c.l.b16 %v64
    %v196 = vunpack.c.h.b16 %v64
    %v197 = vunpack.c.l.b16 %v65
    %v198 = vunpack.c.h.b16 %v65
    %v199 = vunpack.c.l.b16 %v66
    %v200 = vunpack.c.h.b16 %v66
    %v201 = vunpack.c.l.b16 %v67
    %v202 = vunpack.c.h.b16 %v67
    %v203 = vunpack.c.l.b16 %v68
    %v204 = vunpack.c.h.b16 %v68
    %v205 = vunpack.c.l.b16 %v69
    %v206 = vunpack.c.h.b16 %v69
    %v207 = vunpack.c.l.b16 %v70
    %v208 = vunpack.c.h.b16 %v70
    %v209 = vunpack.c.l.b16 %v71
    %v210 = vunpack.c.h.b16 %v71
    %v211 = vunpack.c.l.b16 %v72
    %v212 = vunpack.c.h.b16 %v72
    %v213 = vunpack.c.l.b16 %v73
    %v214 = vunpack.c.h.b16 %v73
    %v215 = vunpack.c.l.b16 %v74
    %v216 = vunpack.c.h.b16 %v74
    %v217 = vpack.c.b16 %v139, %v137
    %v218 = vpack.c.b16 %v140, %v138
    %v219 = vpack.c.b16 %v143, %v141
    %v220 = vpack.c.b16 %v144, %v142
    %v221 = vpack.c.b16 %v147, %v145
    %v222 = vpack.c.b16 %v148, %v146
    %v223 = vpack.c.b16 %v151, %v149
    %v224 = vpack.c.b16 %v152, %v150
    %v225 = vpack.c.b16 %v155, %v153
    %v226 = vpack.c.b16 %v156, %v154
    %v227 = vpack.c.b16 %v159, %v157
    %v228 = vpack.c.b16 %v160, %v158
    %v229 = vpack.c.b16 %v163, %v161
    %v230 = vpack.c.b16 %v164, %v162
    %v231 = vpack.c.b16 %v167, %v165
    %v232 = vpack.c.b16 %v168, %v166
    %v233 = vpack.c.b16 %v171, %v169
    %v234 = vpack.c.b16 %v172, %v170
    %v235 = vpack.c.b16 %v175, %v173
    %v236 = vpack.c.b16 %v176, %v174
    %v237 = vpack.c.b16 %v179, %v177
    %v238 = vpack.c.b16 %v180, %v178
    %v239 = vpack.c.b16 %v183, %v181
    %v240 = vpack.c.b16 %v184, %v182
    %v241 = vpack.c.b16 %v187, %v185
    %v242 = vpack.c.b16 %v188, %v186
    %v243 = vpack.c.b16 %v191, %v189
    %v244 = vpack.c.b16 %v192, %v190
    %v245 = vpack.c.b16 %v195, %v193
    %v246 = vpack.c.b16 %v196, %v194
    %v247 = vpack.c.b16 %v199, %v197
    %v248 = vpack.c.b16 %v200, %v198
    %v249 = vpack.c.b16 %v203, %v201
    %v250 = vpack.c.b16 %v204, %v202
    %v251 = vpack.c.b16 %v207, %v205
    %v252 = vpack.c.b16 %v208, %v206
    %v253 = vpack.c.b16 %v211, %v209
    %v254 = vpack.c.b16 %v212, %v210
    %v255 = vpack.c.b16 %v215, %v213
    %v256 = vpack.c.b16 %v216, %v214
    %vm297 = vcmask 523264
    %v299 = vsel %vm297, %v94, 0
    %301 = vmatprep.subr.bf16.mxu0 %v218
    %302 = vmatpush1.bf16.msra.mxu0 %v217
    %303 = vmatprep.subr.bf16.mxu0 %v220
    %304 = vmatpush1.bf16.msra.mxu0 %v219
    %305 = vmatprep.subr.bf16.mxu0 %v222
    %306 = vmatpush1.bf16.msra.mxu0 %v221
    %307 = vmatprep.subr.bf16.mxu0 %v224
    %308 = vmatpush1.bf16.msra.mxu0 %v223
    %309 = vmatprep.subr.bf16.mxu0 %v226
    %310 = vmatpush1.bf16.msra.mxu0 %v225
    %311 = vmatprep.subr.bf16.mxu0 %v228
    %312 = vmatpush1.bf16.msra.mxu0 %v227
    %313 = vmatprep.subr.bf16.mxu0 %v230
    %314 = vmatpush1.bf16.msra.mxu0 %v229
    %315 = vmatprep.subr.bf16.mxu0 %v232
    %316 = vmatpush1.bf16.msra.mxu0 %v231
    %317 = vmatprep.subr.bf16.mxu0 %v234
    %318 = vmatpush1.bf16.msra.mxu0 %v233
    %319 = vmatprep.subr.bf16.mxu0 %v236
    %320 = vmatpush1.bf16.msra.mxu0 %v235
    %321 = vmatprep.subr.bf16.mxu0 %v238
    %322 = vmatpush1.bf16.msra.mxu0 %v237
    %323 = vmatprep.subr.bf16.mxu0 %v240
    %324 = vmatpush1.bf16.msra.mxu0 %v239
    %325 = vmatprep.subr.bf16.mxu0 %v242
    %326 = vmatpush1.bf16.msra.mxu0 %v241
    %327 = vmatprep.subr.bf16.mxu0 %v244
    %328 = vmatpush1.bf16.msra.mxu0 %v243
    %329 = vmatprep.subr.bf16.mxu0 %v246
    %330 = vmatpush1.bf16.msra.mxu0 %v245
    %331 = vmatprep.subr.bf16.mxu0 %v248
    %332 = vmatpush1.bf16.msra.mxu0 %v247
    %333 = vmatprep.mubr.bf16.mxu0 %v93
    %334 = vmatmul.mubr.bf16.gmra.mrb[0].mxu0 %v92
    %v335 = vpop.f32.mrb[0].mxu0
    %v336 = vadd.f32 %v80, %v335
    %v337 = vpop.f32.mrb[0].mxu0
    %v338 = vadd.f32 %v84, %v337
    %v339 = vpop.f32.mrb[0].mxu0
    %v340 = vpop.f32.mrb[0].mxu0
    %341 = vdwg.mxu0
    %342 = vmatprep.subr.bf16.mxu0 %v250
    %343 = vmatpush1.bf16.msra.mxu0 %v249
    %344 = vmatprep.subr.bf16.mxu0 %v252
    %345 = vmatpush1.bf16.msra.mxu0 %v251
    %346 = vmatprep.subr.bf16.mxu0 %v254
    %347 = vmatpush1.bf16.msra.mxu0 %v253
    %348 = vmatprep.subr.bf16.mxu0 %v256
    %349 = vmatpush1.bf16.msra.mxu0 %v255
    %350 = vmatprep.subr.bf16.mxu0 0
    %351 = vmatpush1.bf16.msra.mxu0 0
    %352 = vmatprep.subr.bf16.mxu0 0
    %353 = vmatpush1.bf16.msra.mxu0 0
    %354 = vmatprep.subr.bf16.mxu0 0
    %355 = vmatpush1.bf16.msra.mxu0 0
    %356 = vmatprep.subr.bf16.mxu0 0
    %357 = vmatpush1.bf16.msra.mxu0 0
    %358 = vmatprep.subr.bf16.mxu0 0
    %359 = vmatpush1.bf16.msra.mxu0 0
    %360 = vmatprep.subr.bf16.mxu0 0
    %361 = vmatpush1.bf16.msra.mxu0 0
    %362 = vmatprep.subr.bf16.mxu0 0
    %363 = vmatpush1.bf16.msra.mxu0 0
    %364 = vmatprep.subr.bf16.mxu0 0
    %365 = vmatpush1.bf16.msra.mxu0 0
    %366 = vmatprep.subr.bf16.mxu0 0
    %367 = vmatpush1.bf16.msra.mxu0 0
    %368 = vmatprep.subr.bf16.mxu0 0
    %369 = vmatpush1.bf16.msra.mxu0 0
    %370 = vmatprep.subr.bf16.mxu0 0
    %371 = vmatpush1.bf16.msra.mxu0 0
    %372 = vmatprep.subr.bf16.mxu0 0
    %373 = vmatpush1.bf16.msra.mxu0 0
    %374 = vmatprep.mubr.bf16.mxu0 0
    %375 = vmatmul.mubr.bf16.gmra.mrb[0].mxu0 %v299
    %v376 = vpop.f32.mrb[0].mxu0
    %v377 = vadd.f32 %v336, %v376
    %v378 = vpop.f32.mrb[0].mxu0
    %v379 = vadd.f32 %v338, %v378
    %v380 = vpop.f32.mrb[0].mxu0
    %v381 = vpop.f32.mrb[0].mxu0
    %382 = vdwg.mxu0
    %v383 = vlaneseq
    %v384 = vand.u32 %v383, 127
    %v385 = vadd.s32 %v384, 128
    %vm386 = vcmp.lt.s32.totalorder %v384, 160
    %vm387 = vcmp.lt.s32.totalorder %v385, 160
    %v388 = vmax.f32 %v377, 0.0
    %v389 = vmax.f32 %v379, 0.0
    %vm390 = vcmp.gt.f32.partialorder %v377, 0.0
    %vm391 = vcmp.gt.f32.partialorder %v379, 0.0
    %v392 = vmin.f32 %v377, 0.0
    %v393 = vmin.f32 %v379, 0.0
    %v394 = vmul.f32 %v392, 1.442695
    %v395 = vpow.pop %v394
    %v396 = vmul.f32 %v393, 1.442695
    %v397 = vpow.pop %v396
    %v398 = vsub.f32 %v395, 1.0
    %v399 = vsub.f32 %v397, 1.0
    %v400 = vsel %vm390, %v377, %v398
    %v401 = vsel %vm391, %v379, %v399
    %v402 = vsel %vm386, %v388, %v400
    %v403 = vsel %vm387, %v389, %v401
    %v404 = vpack.c.bf16 %v402, %v402
    %v405 = vpack.c.bf16 %v403, %v403
    %v406 = vld [vmem:[#allocation2 + $0x140] sm:$0xf]
    %v407 = vld [vmem:[#allocation2 + $0x148] sm:$0xf]
    %v408 = vld [vmem:[#allocation2 + $0x150] sm:$0xf]
    %v409 = vld [vmem:[#allocation2 + $0x158] sm:$0xf]
    %v410 = vld [vmem:[#allocation2 + $0x160] sm:$0xf]
    %v411 = vld [vmem:[#allocation2 + $0x168] sm:$0xf]
    %v412 = vld [vmem:[#allocation2 + $0x170] sm:$0xf]
    %v413 = vld [vmem:[#allocation2 + $0x178] sm:$0xf]
    %v414 = vld [vmem:[#allocation2 + $0x180] sm:$0xf]
    %v415 = vld [vmem:[#allocation2 + $0x188] sm:$0xf]
    %v416 = vld [vmem:[#allocation2 + $0x190] sm:$0xf]
    %v417 = vld [vmem:[#allocation2 + $0x198] sm:$0xf]
    %v418 = vld [vmem:[#allocation2 + $0x1a0] sm:$0xf]
    %v419 = vld [vmem:[#allocation2 + $0x1a8] sm:$0xf]
    %v420 = vld [vmem:[#allocation2 + $0x1b0] sm:$0xf]
    %v421 = vld [vmem:[#allocation2 + $0x1b8] sm:$0xf]
    %v422 = vld [vmem:[#allocation2 + $0x1c0] sm:$0xf]
    %v423 = vld [vmem:[#allocation2 + $0x1c8] sm:$0xf]
    %v424 = vld [vmem:[#allocation2 + $0x1d0] sm:$0xf]
    %v425 = vld [vmem:[#allocation2 + $0x1d8] sm:$0xf]
    %v426 = vld [vmem:[#allocation2 + $0x1e0] sm:$0xf]
    %v427 = vld [vmem:[#allocation2 + $0x1e8] sm:$0xf]
    %v428 = vld [vmem:[#allocation2 + $0x1f0] sm:$0xf]
    %v429 = vld [vmem:[#allocation2 + $0x1f8] sm:$0xf]
    %v430 = vld [vmem:[#allocation2 + $0x200] sm:$0xf]
    %v431 = vld [vmem:[#allocation2 + $0x208] sm:$0xf]
    %v432 = vld [vmem:[#allocation2 + $0x210] sm:$0xf]
    %v433 = vld [vmem:[#allocation2 + $0x218] sm:$0xf]
    %v434 = vld [vmem:[%s3 + $0x1] ss:$0 sm:$0xff]
    %v463 = vunpack.c.l.b16 %v406
    %v464 = vunpack.c.l.b16 %v407
    %v465 = vunpack.c.l.b16 %v408
    %v466 = vunpack.c.l.b16 %v409
    %v467 = vunpack.c.l.b16 %v410
    %v468 = vunpack.c.l.b16 %v411
    %v469 = vunpack.c.l.b16 %v412
    %v470 = vunpack.c.l.b16 %v413
    %v471 = vunpack.c.l.b16 %v414
    %v472 = vunpack.c.l.b16 %v415
    %v473 = vunpack.c.l.b16 %v416
    %v474 = vunpack.c.l.b16 %v417
    %v475 = vunpack.c.l.b16 %v418
    %v476 = vunpack.c.l.b16 %v419
    %v477 = vunpack.c.l.b16 %v420
    %v478 = vunpack.c.l.b16 %v421
    %v479 = vunpack.c.l.b16 %v422
    %v480 = vunpack.c.l.b16 %v423
    %v481 = vunpack.c.l.b16 %v424
    %v482 = vunpack.c.l.b16 %v425
    %v483 = vunpack.c.l.b16 %v426
    %v484 = vunpack.c.l.b16 %v427
    %v485 = vunpack.c.l.b16 %v428
    %v486 = vunpack.c.l.b16 %v429
    %v487 = vunpack.c.l.b16 %v430
    %v488 = vunpack.c.l.b16 %v431
    %v489 = vunpack.c.l.b16 %v432
    %v490 = vunpack.c.l.b16 %v433
    %v491 = vpack.c.b16 %v464, %v463
    %v492 = vpack.c.b16 %v466, %v465
    %v493 = vpack.c.b16 %v468, %v467
    %v494 = vpack.c.b16 %v470, %v469
    %v495 = vpack.c.b16 %v472, %v471
    %v496 = vpack.c.b16 %v474, %v473
    %v497 = vpack.c.b16 %v476, %v475
    %v498 = vpack.c.b16 %v478, %v477
    %v499 = vpack.c.b16 %v480, %v479
    %v500 = vpack.c.b16 %v482, %v481
    %v501 = vpack.c.b16 %v484, %v483
    %v502 = vpack.c.b16 %v486, %v485
    %v503 = vpack.c.b16 %v488, %v487
    %v504 = vpack.c.b16 %v490, %v489
    %vm519 = vcmask 785408
    %v521 = vsel %vm519, %v405, 0
    %523 = vmatprep.subr.bf16.mxu0 0
    %524 = vmatpush1.bf16.msra.mxu0 %v491
    %525 = vmatprep.subr.bf16.mxu0 0
    %526 = vmatpush1.bf16.msra.mxu0 %v492
    %527 = vmatprep.subr.bf16.mxu0 0
    %528 = vmatpush1.bf16.msra.mxu0 %v493
    %529 = vmatprep.subr.bf16.mxu0 0
    %530 = vmatpush1.bf16.msra.mxu0 %v494
    %531 = vmatprep.subr.bf16.mxu0 0
    %532 = vmatpush1.bf16.msra.mxu0 %v495
    %533 = vmatprep.subr.bf16.mxu0 0
    %534 = vmatpush1.bf16.msra.mxu0 %v496
    %535 = vmatprep.subr.bf16.mxu0 0
    %536 = vmatpush1.bf16.msra.mxu0 %v497
    %537 = vmatprep.subr.bf16.mxu0 0
    %538 = vmatpush1.bf16.msra.mxu0 %v498
    %539 = vmatprep.subr.bf16.mxu0 0
    %540 = vmatpush1.bf16.msra.mxu0 %v499
    %541 = vmatprep.subr.bf16.mxu0 0
    %542 = vmatpush1.bf16.msra.mxu0 %v500
    %543 = vmatprep.subr.bf16.mxu0 0
    %544 = vmatpush1.bf16.msra.mxu0 %v501
    %545 = vmatprep.subr.bf16.mxu0 0
    %546 = vmatpush1.bf16.msra.mxu0 %v502
    %547 = vmatprep.subr.bf16.mxu0 0
    %548 = vmatpush1.bf16.msra.mxu0 %v503
    %549 = vmatprep.subr.bf16.mxu0 0
    %550 = vmatpush1.bf16.msra.mxu0 %v504
    %551 = vmatprep.subr.bf16.mxu0 0
    %552 = vmatpush1.bf16.msra.mxu0 0
    %553 = vmatprep.subr.bf16.mxu0 0
    %554 = vmatpush1.bf16.msra.mxu0 0
    %555 = vmatprep.mubr.bf16.mxu0 %v521
    %556 = vmatmul.mubr.bf16.gmra.mrb[0].mxu0 %v404
    %v557 = vpop.f32.mrb[0].mxu0
    %v558 = vadd.f32 %v434, %v557
    %v559 = vpop.f32.mrb[0].mxu0
    %v560 = vpop.f32.mrb[0].mxu0
    %v561 = vpop.f32.mrb[0].mxu0
    %562 = vdwg.mxu0
    %vm563 = vcmp.lt.s32.totalorder %v384, 16
    %v564 = vmax.f32 %v558, 0.0
    %vm565 = vcmp.gt.f32.partialorder %v558, 0.0
    %v566 = vmin.f32 %v558, 0.0
    %v567 = vmul.f32 %v566, 1.442695
    %v568 = vpow.pop %v567
    %v569 = vsub.f32 %v568, 1.0
    %v570 = vsel %vm565, %v558, %v569
    %v571 = vsel %vm563, %v564, %v570
    %v572 = vpack.c.bf16 %v571, %v571
    %v573 = vld [vmem:[#allocation2 + $0x220] sm:$0xff]
    %v574 = vld [vmem:[#allocation2 + $0x228] sm:$0xff]
    %v575 = vld [vmem:[#allocation2 + $0x230] sm:$0xff]
    %v576 = vld [vmem:[#allocation2 + $0x238] sm:$0xff]
    %v577 = vld [vmem:[#allocation2 + $0x240] sm:$0xff]
    %v578 = vld [vmem:[#allocation2 + $0x248] sm:$0xff]
    %s579 = scalar_lea.vmem %s3, 2
    %v580 = vld [vmem:[%s579] ss:$8 sm:$0x3]
    %v582 = vlaneseq
    %v583 = vshrl.u32 %v582, 7
    %v584 = vsub.s32 0, %v583
    %v585 = vrot.slane %v580, %v584
    %v586 = vlaneseq
    %v587 = vshrl.u32 %v586, 7
    %v588 = vsub.s32 1, %v587
    %v589 = vrot.slane %v580, %v588
    %v598 = vunpack.c.l.b16 %v573
    %v599 = vunpack.c.h.b16 %v573
    %v600 = vunpack.c.l.b16 %v574
    %v601 = vunpack.c.h.b16 %v574
    %v602 = vunpack.c.l.b16 %v575
    %v603 = vunpack.c.h.b16 %v575
    %v604 = vunpack.c.l.b16 %v576
    %v605 = vunpack.c.h.b16 %v576
    %v606 = vunpack.c.l.b16 %v577
    %v607 = vunpack.c.h.b16 %v577
    %v608 = vunpack.c.l.b16 %v578
    %v609 = vunpack.c.h.b16 %v578
    %v610 = vpack.c.b16 %v600, %v598
    %v611 = vpack.c.b16 %v601, %v599
    %v612 = vpack.c.b16 %v604, %v602
    %v613 = vpack.c.b16 %v605, %v603
    %v614 = vpack.c.b16 %v608, %v606
    %v615 = vpack.c.b16 %v609, %v607
    %vm622 = vcmask 392192
    %v624 = vsel %vm622, %v572, 0
    %626 = vmatprep.subr.bf16.mxu0 %v611
    %627 = vmatpush1.bf16.msra.mxu0 %v610
    %628 = vmatprep.subr.bf16.mxu0 %v613
    %629 = vmatpush1.bf16.msra.mxu0 %v612
    %630 = vmatprep.subr.bf16.mxu0 %v615
    %631 = vmatpush1.bf16.msra.mxu0 %v614
    %632 = vmatprep.subr.bf16.mxu0 0
    %633 = vmatpush1.bf16.msra.mxu0 0
    %634 = vmatprep.subr.bf16.mxu0 0
    %635 = vmatpush1.bf16.msra.mxu0 0
    %636 = vmatprep.subr.bf16.mxu0 0
    %637 = vmatpush1.bf16.msra.mxu0 0
    %638 = vmatprep.subr.bf16.mxu0 0
    %639 = vmatpush1.bf16.msra.mxu0 0
    %640 = vmatprep.subr.bf16.mxu0 0
    %641 = vmatpush1.bf16.msra.mxu0 0
    %642 = vmatprep.subr.bf16.mxu0 0
    %643 = vmatpush1.bf16.msra.mxu0 0
    %644 = vmatprep.subr.bf16.mxu0 0
    %645 = vmatpush1.bf16.msra.mxu0 0
    %646 = vmatprep.subr.bf16.mxu0 0
    %647 = vmatpush1.bf16.msra.mxu0 0
    %648 = vmatprep.subr.bf16.mxu0 0
    %649 = vmatpush1.bf16.msra.mxu0 0
    %650 = vmatprep.subr.bf16.mxu0 0
    %651 = vmatpush1.bf16.msra.mxu0 0
    %652 = vmatprep.subr.bf16.mxu0 0
    %653 = vmatpush1.bf16.msra.mxu0 0
    %654 = vmatprep.subr.bf16.mxu0 0
    %655 = vmatpush1.bf16.msra.mxu0 0
    %656 = vmatprep.subr.bf16.mxu0 0
    %657 = vmatpush1.bf16.msra.mxu0 0
    %658 = vmatprep.mubr.bf16.mxu0 0
    %659 = vmatmul.mubr.bf16.gmra.mrb[0].mxu0 %v624
    %v660 = vpop.f32.mrb[0].mxu0
    %v661 = vadd.f32 %v585, %v660
    %v662 = vpop.f32.mrb[0].mxu0
    %v663 = vadd.f32 %v589, %v662
    %v664 = vpop.f32.mrb[0].mxu0
    %v665 = vpop.f32.mrb[0].mxu0
    %666 = vdwg.mxu0
    %vm667 = vcmp.gt.f32.partialorder %v661, 0.0
    %vm668 = vcmp.gt.f32.partialorder %v663, 0.0
    %v669 = vmin.f32 %v661, 0.0
    %v670 = vmin.f32 %v663, 0.0
    %v671 = vmul.f32 %v669, 1.442695
    %v672 = vpow.pop %v671
    %v673 = vmul.f32 %v670, 1.442695
    %v674 = vpow.pop %v673
    %v675 = vsub.f32 %v672, 1.0
    %v676 = vsub.f32 %v674, 1.0
    %v677 = vsel %vm667, %v661, %v675
    %v678 = vsel %vm668, %v663, %v676
    %v679 = vpack.c.bf16 %v677, %v677
    %v680 = vpack.c.bf16 %v678, %v678
    %v681 = vld [vmem:[#allocation2 + $0x250] sm:$0xf]
    %v682 = vld [vmem:[#allocation2 + $0x258] sm:$0xf]
    %v683 = vld [vmem:[#allocation2 + $0x260] sm:$0xf]
    %v684 = vld [vmem:[#allocation2 + $0x268] sm:$0xf]
    %v685 = vld [vmem:[#allocation2 + $0x270] sm:$0xf]
    %v686 = vld [vmem:[#allocation2 + $0x278] sm:$0xf]
    %v687 = vld [vmem:[#allocation2 + $0x280] sm:$0xf]
    %v688 = vld [vmem:[#allocation2 + $0x288] sm:$0xf]
    %v689 = vld [vmem:[#allocation2 + $0x290] sm:$0xf]
    %v690 = vld [vmem:[#allocation2 + $0x298] sm:$0xf]
    %v691 = vld [vmem:[#allocation2 + $0x2a0] sm:$0xf]
    %v692 = vld [vmem:[#allocation2 + $0x2a8] sm:$0xf]
    %v693 = vld [vmem:[#allocation2 + $0x2b0] sm:$0xf]
    %v694 = vld [vmem:[#allocation2 + $0x2b8] sm:$0xf]
    %v695 = vld [vmem:[#allocation2 + $0x2c0] sm:$0xf]
    %v696 = vld [vmem:[#allocation2 + $0x2c8] sm:$0xf]
    %v697 = vld [vmem:[#allocation2 + $0x2d0] sm:$0xf]
    %v698 = vld [vmem:[#allocation2 + $0x2d8] sm:$0xf]
    %v699 = vld [vmem:[#allocation2 + $0x2e0] sm:$0xf]
    %v700 = vld [vmem:[#allocation2 + $0x2e8] sm:$0xf]
    %v701 = vld [vmem:[#allocation2 + $0x2f0] sm:$0xf]
    %v702 = vld [vmem:[#allocation2 + $0x2f8] sm:$0xf]
    %v703 = vld [vmem:[#allocation2 + $0x300] sm:$0xf]
    %v704 = vld [vmem:[#allocation2 + $0x308] sm:$0xf]
    %v705 = vld [vmem:[#allocation2 + $0x310] sm:$0xf]
    %v706 = vld [vmem:[#allocation2 + $0x318] sm:$0xf]
    %v707 = vld [vmem:[#allocation2 + $0x320] sm:$0xf]
    %v708 = vld [vmem:[#allocation2 + $0x328] sm:$0xf]
    %v709 = vld [vmem:[#allocation2 + $0x330] sm:$0xf]
    %v710 = vld [vmem:[#allocation2 + $0x338] sm:$0xf]
    %v711 = vld [vmem:[#allocation2 + $0x340] sm:$0xf]
    %v712 = vld [vmem:[#allocation2 + $0x348] sm:$0xf]
    %v713 = vld [vmem:[#allocation2 + $0x350] sm:$0xf]
    %v714 = vld [vmem:[#allocation2 + $0x358] sm:$0xf]
    %v715 = vld [vmem:[#allocation2 + $0x360] sm:$0xf]
    %v716 = vld [vmem:[#allocation2 + $0x368] sm:$0xf]
    %v717 = vld [vmem:[#allocation2 + $0x370] sm:$0xf]
    %v718 = vld [vmem:[#allocation2 + $0x378] sm:$0xf]
    %v719 = vld [vmem:[#allocation2 + $0x380] sm:$0xf]
    %v720 = vld [vmem:[#allocation2 + $0x388] sm:$0xf]
    %v721 = vld [vmem:[#allocation2 + $0x390] sm:$0xf]
    %v722 = vld [vmem:[#allocation2 + $0x398] sm:$0xf]
    %v723 = vld [vmem:[#allocation2 + $0x3a0] sm:$0xf]
    %v724 = vld [vmem:[#allocation2 + $0x3a8] sm:$0xf]
    %v725 = vld [vmem:[#allocation2 + $0x3b0] sm:$0xf]
    %v726 = vld [vmem:[#allocation2 + $0x3b8] sm:$0xf]
    %v727 = vld [vmem:[#allocation2 + $0x3c0] sm:$0xf]
    %v728 = vld [vmem:[#allocation2 + $0x3c8] sm:$0xf]
    %v729 = vld [vmem:[#allocation2 + $0x3d0] sm:$0xf]
    %v730 = vld [vmem:[#allocation2 + $0x3d8] sm:$0xf]
    %v731 = vld [vmem:[#allocation2 + $0x3e0] sm:$0xf]
    %v732 = vld [vmem:[#allocation2 + $0x3e8] sm:$0xf]
    %v733 = vld [vmem:[#allocation2 + $0x3f0] sm:$0xf]
    %v734 = vld [vmem:[#allocation2 + $0x3f8] sm:$0xf]
    %v735 = vld [vmem:[#allocation2 + $0x400] sm:$0xf]
    %v736 = vld [vmem:[#allocation2 + $0x408] sm:$0xf]
    %v737 = vld [vmem:[#allocation2 + $0x410] sm:$0xf]
    %v738 = vld [vmem:[#allocation2 + $0x418] sm:$0xf]
    %v739 = vld [vmem:[#allocation2 + $0x420] sm:$0xf]
    %v740 = vld [vmem:[#allocation2 + $0x428] sm:$0xf]
    %v781 = vunpack.c.l.b16 %v701
    %v782 = vunpack.c.l.b16 %v702
    %v783 = vunpack.c.l.b16 %v703
    %v784 = vunpack.c.l.b16 %v704
    %v785 = vunpack.c.l.b16 %v705
    %v786 = vunpack.c.l.b16 %v706
    %v787 = vunpack.c.l.b16 %v707
    %v788 = vunpack.c.l.b16 %v708
    %v789 = vunpack.c.l.b16 %v709
    %v790 = vunpack.c.l.b16 %v710
    %v791 = vunpack.c.l.b16 %v711
    %v792 = vunpack.c.l.b16 %v712
    %v793 = vunpack.c.l.b16 %v713
    %v794 = vunpack.c.l.b16 %v714
    %v795 = vunpack.c.l.b16 %v715
    %v796 = vunpack.c.l.b16 %v716
    %v797 = vunpack.c.l.b16 %v717
    %v798 = vunpack.c.l.b16 %v718
    %v799 = vunpack.c.l.b16 %v719
    %v800 = vunpack.c.l.b16 %v720
    %v801 = vunpack.c.l.b16 %v721
    %v802 = vunpack.c.l.b16 %v722
    %v803 = vunpack.c.l.b16 %v723
    %v804 = vunpack.c.l.b16 %v724
    %v805 = vunpack.c.l.b16 %v725
    %v806 = vunpack.c.l.b16 %v726
    %v807 = vunpack.c.l.b16 %v727
    %v808 = vunpack.c.l.b16 %v728
    %v809 = vunpack.c.l.b16 %v729
    %v810 = vunpack.c.l.b16 %v730
    %v811 = vunpack.c.l.b16 %v731
    %v812 = vunpack.c.l.b16 %v732
    %v813 = vunpack.c.l.b16 %v733
    %v814 = vunpack.c.l.b16 %v734
    %v815 = vunpack.c.l.b16 %v735
    %v816 = vunpack.c.l.b16 %v736
    %v817 = vunpack.c.l.b16 %v737
    %v818 = vunpack.c.l.b16 %v738
    %v819 = vunpack.c.l.b16 %v739
    %v820 = vunpack.c.l.b16 %v740
    %v821 = vpack.c.b16 %v782, %v781
    %v822 = vpack.c.b16 %v784, %v783
    %v823 = vpack.c.b16 %v786, %v785
    %v824 = vpack.c.b16 %v788, %v787
    %v825 = vpack.c.b16 %v790, %v789
    %v826 = vpack.c.b16 %v792, %v791
    %v827 = vpack.c.b16 %v794, %v793
    %v828 = vpack.c.b16 %v796, %v795
    %v829 = vpack.c.b16 %v798, %v797
    %v830 = vpack.c.b16 %v800, %v799
    %v831 = vpack.c.b16 %v802, %v801
    %v832 = vpack.c.b16 %v804, %v803
    %v833 = vpack.c.b16 %v806, %v805
    %v834 = vpack.c.b16 %v808, %v807
    %v835 = vpack.c.b16 %v810, %v809
    %v836 = vpack.c.b16 %v812, %v811
    %v837 = vpack.c.b16 %v814, %v813
    %v838 = vpack.c.b16 %v816, %v815
    %v839 = vpack.c.b16 %v818, %v817
    %v840 = vpack.c.b16 %v820, %v819
    %861 = vmatprep.subr.bf16.mxu0 0
    %862 = vmatpush1.bf16.msra.mxu0 %v821
    %863 = vmatprep.subr.bf16.mxu0 0
    %864 = vmatpush1.bf16.msra.mxu0 %v822
    %865 = vmatprep.subr.bf16.mxu0 0
    %866 = vmatpush1.bf16.msra.mxu0 %v823
    %867 = vmatprep.subr.bf16.mxu0 0
    %868 = vmatpush1.bf16.msra.mxu0 %v824
    %869 = vmatprep.subr.bf16.mxu0 0
    %870 = vmatpush1.bf16.msra.mxu0 %v825
    %871 = vmatprep.subr.bf16.mxu0 0
    %872 = vmatpush1.bf16.msra.mxu0 %v826
    %873 = vmatprep.subr.bf16.mxu0 0
    %874 = vmatpush1.bf16.msra.mxu0 %v827
    %875 = vmatprep.subr.bf16.mxu0 0
    %876 = vmatpush1.bf16.msra.mxu0 %v828
    %877 = vmatprep.subr.bf16.mxu0 0
    %878 = vmatpush1.bf16.msra.mxu0 %v829
    %879 = vmatprep.subr.bf16.mxu0 0
    %880 = vmatpush1.bf16.msra.mxu0 %v830
    %881 = vmatprep.subr.bf16.mxu0 0
    %882 = vmatpush1.bf16.msra.mxu0 %v831
    %883 = vmatprep.subr.bf16.mxu0 0
    %884 = vmatpush1.bf16.msra.mxu0 %v832
    %885 = vmatprep.subr.bf16.mxu0 0
    %886 = vmatpush1.bf16.msra.mxu0 %v833
    %887 = vmatprep.subr.bf16.mxu0 0
    %888 = vmatpush1.bf16.msra.mxu0 %v834
    %889 = vmatprep.subr.bf16.mxu0 0
    %890 = vmatpush1.bf16.msra.mxu0 %v835
    %891 = vmatprep.subr.bf16.mxu0 0
    %892 = vmatpush1.bf16.msra.mxu0 %v836
    %893 = vmatprep.mubr.bf16.mxu0 %v93
    %894 = vmatmul.mubr.bf16.gmra.mrb[0].mxu0 %v92
    %v895 = vpop.f32.mrb[0].mxu0
    %v896 = vadd.f32 0.0, %v895
    %v897 = vpop.f32.mrb[0].mxu0
    %v898 = vpop.f32.mrb[0].mxu0
    %v899 = vpop.f32.mrb[0].mxu0
    %900 = vdwg.mxu0
    %901 = vmatprep.subr.bf16.mxu0 0
    %902 = vmatpush1.bf16.msra.mxu0 %v837
    %903 = vmatprep.subr.bf16.mxu0 0
    %904 = vmatpush1.bf16.msra.mxu0 %v838
    %905 = vmatprep.subr.bf16.mxu0 0
    %906 = vmatpush1.bf16.msra.mxu0 %v839
    %907 = vmatprep.subr.bf16.mxu0 0
    %908 = vmatpush1.bf16.msra.mxu0 %v840
    %909 = vmatprep.subr.bf16.mxu0 0
    %910 = vmatpush1.bf16.msra.mxu0 0
    %911 = vmatprep.subr.bf16.mxu0 0
    %912 = vmatpush1.bf16.msra.mxu0 0
    %913 = vmatprep.subr.bf16.mxu0 0
    %914 = vmatpush1.bf16.msra.mxu0 0
    %915 = vmatprep.subr.bf16.mxu0 0
    %916 = vmatpush1.bf16.msra.mxu0 0
    %917 = vmatprep.subr.bf16.mxu0 0
    %918 = vmatpush1.bf16.msra.mxu0 0
    %919 = vmatprep.subr.bf16.mxu0 0
    %920 = vmatpush1.bf16.msra.mxu0 0
    %921 = vmatprep.subr.bf16.mxu0 0
    %922 = vmatpush1.bf16.msra.mxu0 0
    %923 = vmatprep.subr.bf16.mxu0 0
    %924 = vmatpush1.bf16.msra.mxu0 0
    %925 = vmatprep.subr.bf16.mxu0 0
    %926 = vmatpush1.bf16.msra.mxu0 0
    %927 = vmatprep.subr.bf16.mxu0 0
    %928 = vmatpush1.bf16.msra.mxu0 0
    %929 = vmatprep.subr.bf16.mxu0 0
    %930 = vmatpush1.bf16.msra.mxu0 0
    %931 = vmatprep.subr.bf16.mxu0 0
    %932 = vmatpush1.bf16.msra.mxu0 0
    %933 = vmatprep.mubr.bf16.mxu0 0
    %934 = vmatmul.mubr.bf16.gmra.mrb[0].mxu0 %v299
    %v935 = vpop.f32.mrb[0].mxu0
    %v936 = vadd.f32 %v896, %v935
    %v937 = vpop.f32.mrb[0].mxu0
    %v938 = vpop.f32.mrb[0].mxu0
    %v939 = vpop.f32.mrb[0].mxu0
    %940 = vdwg.mxu0
    %v961 = vunpack.c.l.b16 %v681
    %v962 = vunpack.c.l.b16 %v682
    %v963 = vunpack.c.l.b16 %v683
    %v964 = vunpack.c.l.b16 %v684
    %v965 = vunpack.c.l.b16 %v685
    %v966 = vunpack.c.l.b16 %v686
    %v967 = vunpack.c.l.b16 %v687
    %v968 = vunpack.c.l.b16 %v688
    %v969 = vunpack.c.l.b16 %v689
    %v970 = vunpack.c.l.b16 %v690
    %v971 = vunpack.c.l.b16 %v691
    %v972 = vunpack.c.l.b16 %v692
    %v973 = vunpack.c.l.b16 %v693
    %v974 = vunpack.c.l.b16 %v694
    %v975 = vunpack.c.l.b16 %v695
    %v976 = vunpack.c.l.b16 %v696
    %v977 = vunpack.c.l.b16 %v697
    %v978 = vunpack.c.l.b16 %v698
    %v979 = vunpack.c.l.b16 %v699
    %v980 = vunpack.c.l.b16 %v700
    %v981 = vpack.c.b16 %v962, %v961
    %v982 = vpack.c.b16 %v964, %v963
    %v983 = vpack.c.b16 %v966, %v965
    %v984 = vpack.c.b16 %v968, %v967
    %v985 = vpack.c.b16 %v970, %v969
    %v986 = vpack.c.b16 %v972, %v971
    %v987 = vpack.c.b16 %v974, %v973
    %v988 = vpack.c.b16 %v976, %v975
    %v989 = vpack.c.b16 %v978, %v977
    %v990 = vpack.c.b16 %v980, %v979
    %vm1001 = vcmask 261120
    %v1003 = vsel %vm1001, %v680, 0
    %1005 = vmatprep.subr.bf16.mxu0 0
    %1006 = vmatpush1.bf16.msra.mxu0 %v981
    %1007 = vmatprep.subr.bf16.mxu0 0
    %1008 = vmatpush1.bf16.msra.mxu0 %v982
    %1009 = vmatprep.subr.bf16.mxu0 0
    %1010 = vmatpush1.bf16.msra.mxu0 %v983
    %1011 = vmatprep.subr.bf16.mxu0 0
    %1012 = vmatpush1.bf16.msra.mxu0 %v984
    %1013 = vmatprep.subr.bf16.mxu0 0
    %1014 = vmatpush1.bf16.msra.mxu0 %v985
    %1015 = vmatprep.subr.bf16.mxu0 0
    %1016 = vmatpush1.bf16.msra.mxu0 %v986
    %1017 = vmatprep.subr.bf16.mxu0 0
    %1018 = vmatpush1.bf16.msra.mxu0 %v987
    %1019 = vmatprep.subr.bf16.mxu0 0
    %1020 = vmatpush1.bf16.msra.mxu0 %v988
    %1021 = vmatprep.subr.bf16.mxu0 0
    %1022 = vmatpush1.bf16.msra.mxu0 %v989
    %1023 = vmatprep.subr.bf16.mxu0 0
    %1024 = vmatpush1.bf16.msra.mxu0 %v990
    %1025 = vmatprep.subr.bf16.mxu0 0
    %1026 = vmatpush1.bf16.msra.mxu0 0
    %1027 = vmatprep.subr.bf16.mxu0 0
    %1028 = vmatpush1.bf16.msra.mxu0 0
    %1029 = vmatprep.subr.bf16.mxu0 0
    %1030 = vmatpush1.bf16.msra.mxu0 0
    %1031 = vmatprep.subr.bf16.mxu0 0
    %1032 = vmatpush1.bf16.msra.mxu0 0
    %1033 = vmatprep.subr.bf16.mxu0 0
    %1034 = vmatpush1.bf16.msra.mxu0 0
    %1035 = vmatprep.subr.bf16.mxu0 0
    %1036 = vmatpush1.bf16.msra.mxu0 0
    %1037 = vmatprep.mubr.bf16.mxu0 %v1003
    %1038 = vmatmul.mubr.bf16.gmra.mrb[0].mxu0 %v679
    %v1039 = vpop.f32.mrb[0].mxu0
    %v1040 = vadd.f32 %v936, %v1039
    %v1041 = vpop.f32.mrb[0].mxu0
    %v1042 = vpop.f32.mrb[0].mxu0
    %v1043 = vpop.f32.mrb[0].mxu0
    %1044 = vdwg.mxu0
    %v1045 = vld [vmem:[#allocation2 + $0x430] sm:$0xf]
    %v1046 = vld [vmem:[#allocation2 + $0x438] sm:$0xf]
    %v1047 = vld [vmem:[#allocation2 + $0x440] sm:$0xf]
    %v1048 = vld [vmem:[#allocation2 + $0x448] sm:$0xf]
    %v1049 = vld [vmem:[#allocation2 + $0x450] sm:$0xf]
    %v1050 = vld [vmem:[#allocation2 + $0x458] sm:$0xf]
    %v1057 = vunpack.c.l.b16 %v1045
    %v1058 = vunpack.c.l.b16 %v1046
    %v1059 = vunpack.c.l.b16 %v1047
    %v1060 = vunpack.c.l.b16 %v1048
    %v1061 = vunpack.c.l.b16 %v1049
    %v1062 = vunpack.c.l.b16 %v1050
    %v1063 = vpack.c.b16 %v1058, %v1057
    %v1064 = vpack.c.b16 %v1060, %v1059
    %v1065 = vpack.c.b16 %v1062, %v1061
    %v1070 = vsel %vm622, %v34, 0
    %1072 = vmatprep.subr.bf16.mxu0 0
    %1073 = vmatpush1.bf16.msra.mxu0 %v1063
    %1074 = vmatprep.subr.bf16.mxu0 0
    %1075 = vmatpush1.bf16.msra.mxu0 %v1064
    %1076 = vmatprep.subr.bf16.mxu0 0
    %1077 = vmatpush1.bf16.msra.mxu0 %v1065
    %1078 = vmatprep.subr.bf16.mxu0 0
    %1079 = vmatpush1.bf16.msra.mxu0 0
    %1080 = vmatprep.subr.bf16.mxu0 0
    %1081 = vmatpush1.bf16.msra.mxu0 0
    %1082 = vmatprep.subr.bf16.mxu0 0
    %1083 = vmatpush1.bf16.msra.mxu0 0
    %1084 = vmatprep.subr.bf16.mxu0 0
    %1085 = vmatpush1.bf16.msra.mxu0 0
    %1086 = vmatprep.subr.bf16.mxu0 0
    %1087 = vmatpush1.bf16.msra.mxu0 0
    %1088 = vmatprep.subr.bf16.mxu0 0
    %1089 = vmatpush1.bf16.msra.mxu0 0
    %1090 = vmatprep.subr.bf16.mxu0 0
    %1091 = vmatpush1.bf16.msra.mxu0 0
    %1092 = vmatprep.subr.bf16.mxu0 0
    %1093 = vmatpush1.bf16.msra.mxu0 0
    %1094 = vmatprep.subr.bf16.mxu0 0
    %1095 = vmatpush1.bf16.msra.mxu0 0
    %1096 = vmatprep.subr.bf16.mxu0 0
    %1097 = vmatpush1.bf16.msra.mxu0 0
    %1098 = vmatprep.subr.bf16.mxu0 0
    %1099 = vmatpush1.bf16.msra.mxu0 0
    %1100 = vmatprep.subr.bf16.mxu0 0
    %1101 = vmatpush1.bf16.msra.mxu0 0
    %1102 = vmatprep.subr.bf16.mxu0 0
    %1103 = vmatpush1.bf16.msra.mxu0 0
    %1104 = vmatprep.mubr.bf16.mxu0 0
    %1105 = vmatmul.mubr.bf16.gmra.mrb[0].mxu0 %v1070
    %v1106 = vpop.f32.mrb[0].mxu0
    %v1107 = vadd.f32 0.0, %v1106
    %v1108 = vpop.f32.mrb[0].mxu0
    %v1109 = vpop.f32.mrb[0].mxu0
    %v1110 = vpop.f32.mrb[0].mxu0
    %1111 = vdwg.mxu0
    %v1112 = vadd.f32 %v1040, %v1107
    %v1113 = vld [vmem:[%s3 + $0x3] ss:$0 sm:$0xff]
    %v1114 = vadd.f32 %v1112, %v1113
    %vm1115 = vcmp.gt.f32.partialorder %v1114, 0.0
    %v1116 = vmin.f32 %v1114, 0.0
    %v1117 = vmul.f32 %v1116, 1.442695
    %v1118 = vpow.pop %v1117
    %v1119 = vsub.f32 %v1118, 1.0
    %v1120 = vsel %vm1115, %v1114, %v1119
    %v1121 = vpack.c.bf16 %v1120, %v1120
    %v1122 = vld [vmem:[#allocation2 + $0x460] sm:$0xf]
    %v1123 = vld [vmem:[#allocation2 + $0x468] sm:$0xf]
    %v1124 = vld [vmem:[#allocation2 + $0x470] sm:$0xf]
    %v1125 = vld [vmem:[#allocation2 + $0x478] sm:$0xf]
    %v1126 = vld [vmem:[#allocation2 + $0x480] sm:$0xf]
    %v1127 = vld [vmem:[#allocation2 + $0x488] sm:$0xf]
    %v1128 = vld [vmem:[#allocation2 + $0x490] sm:$0xf]
    %v1129 = vld [vmem:[#allocation2 + $0x498] sm:$0xf]
    %v1130 = vld [vmem:[#allocation2 + $0x4a0] sm:$0xf]
    %v1131 = vld [vmem:[#allocation2 + $0x4a8] sm:$0xf]
    %v1132 = vld [vmem:[#allocation2 + $0x4b0] sm:$0xf]
    %v1133 = vld [vmem:[#allocation2 + $0x4b8] sm:$0xf]
    %v1134 = vld [vmem:[#allocation2 + $0x4c0] sm:$0xf]
    %v1135 = vld [vmem:[#allocation2 + $0x4c8] sm:$0xf]
    %v1136 = vld [vmem:[#allocation2 + $0x4d0] sm:$0xf]
    %v1137 = vld [vmem:[#allocation2 + $0x4d8] sm:$0xf]
    %v1138 = vld [vmem:[%s3 + $0x4] ss:$0 sm:$0xff]
    %v1155 = vunpack.c.l.b16 %v1122
    %v1156 = vunpack.c.l.b16 %v1123
    %v1157 = vunpack.c.l.b16 %v1124
    %v1158 = vunpack.c.l.b16 %v1125
    %v1159 = vunpack.c.l.b16 %v1126
    %v1160 = vunpack.c.l.b16 %v1127
    %v1161 = vunpack.c.l.b16 %v1128
    %v1162 = vunpack.c.l.b16 %v1129
    %v1163 = vunpack.c.l.b16 %v1130
    %v1164 = vunpack.c.l.b16 %v1131
    %v1165 = vunpack.c.l.b16 %v1132
    %v1166 = vunpack.c.l.b16 %v1133
    %v1167 = vunpack.c.l.b16 %v1134
    %v1168 = vunpack.c.l.b16 %v1135
    %v1169 = vunpack.c.l.b16 %v1136
    %v1170 = vunpack.c.l.b16 %v1137
    %v1171 = vpack.c.b16 %v1156, %v1155
    %v1172 = vpack.c.b16 %v1158, %v1157
    %v1173 = vpack.c.b16 %v1160, %v1159
    %v1174 = vpack.c.b16 %v1162, %v1161
    %v1175 = vpack.c.b16 %v1164, %v1163
    %v1176 = vpack.c.b16 %v1166, %v1165
    %v1177 = vpack.c.b16 %v1168, %v1167
    %v1178 = vpack.c.b16 %v1170, %v1169
    %1187 = vmatprep.subr.bf16.mxu0 0
    %1188 = vmatpush1.bf16.msra.mxu0 %v1171
    %1189 = vmatprep.subr.bf16.mxu0 0
    %1190 = vmatpush1.bf16.msra.mxu0 %v1172
    %1191 = vmatprep.subr.bf16.mxu0 0
    %1192 = vmatpush1.bf16.msra.mxu0 %v1173
    %1193 = vmatprep.subr.bf16.mxu0 0
    %1194 = vmatpush1.bf16.msra.mxu0 %v1174
    %1195 = vmatprep.subr.bf16.mxu0 0
    %1196 = vmatpush1.bf16.msra.mxu0 %v1175
    %1197 = vmatprep.subr.bf16.mxu0 0
    %1198 = vmatpush1.bf16.msra.mxu0 %v1176
    %1199 = vmatprep.subr.bf16.mxu0 0
    %1200 = vmatpush1.bf16.msra.mxu0 %v1177
    %1201 = vmatprep.subr.bf16.mxu0 0
    %1202 = vmatpush1.bf16.msra.mxu0 %v1178
    %1203 = vmatprep.subr.bf16.mxu0 0
    %1204 = vmatpush1.bf16.msra.mxu0 0
    %1205 = vmatprep.subr.bf16.mxu0 0
    %1206 = vmatpush1.bf16.msra.mxu0 0
    %1207 = vmatprep.subr.bf16.mxu0 0
    %1208 = vmatpush1.bf16.msra.mxu0 0
    %1209 = vmatprep.subr.bf16.mxu0 0
    %1210 = vmatpush1.bf16.msra.mxu0 0
    %1211 = vmatprep.subr.bf16.mxu0 0
    %1212 = vmatpush1.bf16.msra.mxu0 0
    %1213 = vmatprep.subr.bf16.mxu0 0
    %1214 = vmatpush1.bf16.msra.mxu0 0
    %1215 = vmatprep.subr.bf16.mxu0 0
    %1216 = vmatpush1.bf16.msra.mxu0 0
    %1217 = vmatprep.subr.bf16.mxu0 0
    %1218 = vmatpush1.bf16.msra.mxu0 0
    %1219 = vmatprep.mubr.bf16.mxu0 0
    %1220 = vmatmul.mubr.bf16.gmra.mrb[0].mxu0 %v1121
    %v1221 = vpop.f32.mrb[0].mxu0
    %v1222 = vadd.f32 %v1138, %v1221
    %v1223 = vpop.f32.mrb[0].mxu0
    %v1224 = vpop.f32.mrb[0].mxu0
    %v1225 = vpop.f32.mrb[0].mxu0
    %1226 = vdwg.mxu0
    %vm1227 = vcmp.gt.f32.partialorder %v1222, 0.0
    %v1228 = vmin.f32 %v1222, 0.0
    %v1229 = vmul.f32 %v1228, 1.442695
    %v1230 = vpow.pop %v1229
    %v1231 = vsub.f32 %v1230, 1.0
    %v1232 = vsel %vm1227, %v1222, %v1231
    %v1233 = vpack.c.bf16 %v1232, %v1232
    %v1234 = vld [vmem:[#allocation2 + $0x4e0] sm:$0xf]
    %v1235 = vld [vmem:[#allocation2 + $0x4e8] sm:$0xf]
    %v1236 = vld [vmem:[#allocation2 + $0x4f0] sm:$0xf]
    %v1237 = vld [vmem:[#allocation2 + $0x4f8] sm:$0xf]
    %v1238 = vld [vmem:[#allocation2 + $0x500] sm:$0xf]
    %v1239 = vld [vmem:[#allocation2 + $0x508] sm:$0xf]
    %v1240 = vld [vmem:[#allocation2 + $0x510] sm:$0xf]
    %v1241 = vld [vmem:[#allocation2 + $0x518] sm:$0xf]
    %v1242 = vld [vmem:[#allocation2 + $0x520] sm:$0xf]
    %v1243 = vld [vmem:[#allocation2 + $0x528] sm:$0xf]
    %v1244 = vld [vmem:[#allocation2 + $0x530] sm:$0xf]
    %v1245 = vld [vmem:[#allocation2 + $0x538] sm:$0xf]
    %v1246 = vld [vmem:[#allocation2 + $0x540] sm:$0xf]
    %v1247 = vld [vmem:[#allocation2 + $0x548] sm:$0xf]
    %v1248 = vld [vmem:[#allocation2 + $0x550] sm:$0xf]
    %v1249 = vld [vmem:[#allocation2 + $0x558] sm:$0xf]
    %v1250 = vld [vmem:[%s3 + $0x5] ss:$0 sm:$0xff]
    %v1267 = vunpack.c.l.b16 %v1234
    %v1268 = vunpack.c.l.b16 %v1235
    %v1269 = vunpack.c.l.b16 %v1236
    %v1270 = vunpack.c.l.b16 %v1237
    %v1271 = vunpack.c.l.b16 %v1238
    %v1272 = vunpack.c.l.b16 %v1239
    %v1273 = vunpack.c.l.b16 %v1240
    %v1274 = vunpack.c.l.b16 %v1241
    %v1275 = vunpack.c.l.b16 %v1242
    %v1276 = vunpack.c.l.b16 %v1243
    %v1277 = vunpack.c.l.b16 %v1244
    %v1278 = vunpack.c.l.b16 %v1245
    %v1279 = vunpack.c.l.b16 %v1246
    %v1280 = vunpack.c.l.b16 %v1247
    %v1281 = vunpack.c.l.b16 %v1248
    %v1282 = vunpack.c.l.b16 %v1249
    %v1283 = vpack.c.b16 %v1268, %v1267
    %v1284 = vpack.c.b16 %v1270, %v1269
    %v1285 = vpack.c.b16 %v1272, %v1271
    %v1286 = vpack.c.b16 %v1274, %v1273
    %v1287 = vpack.c.b16 %v1276, %v1275
    %v1288 = vpack.c.b16 %v1278, %v1277
    %v1289 = vpack.c.b16 %v1280, %v1279
    %v1290 = vpack.c.b16 %v1282, %v1281
    %1299 = vmatprep.subr.bf16.mxu0 0
    %1300 = vmatpush1.bf16.msra.mxu0 %v1283
    %1301 = vmatprep.subr.bf16.mxu0 0
    %1302 = vmatpush1.bf16.msra.mxu0 %v1284
    %1303 = vmatprep.subr.bf16.mxu0 0
    %1304 = vmatpush1.bf16.msra.mxu0 %v1285
    %1305 = vmatprep.subr.bf16.mxu0 0
    %1306 = vmatpush1.bf16.msra.mxu0 %v1286
    %1307 = vmatprep.subr.bf16.mxu0 0
    %1308 = vmatpush1.bf16.msra.mxu0 %v1287
    %1309 = vmatprep.subr.bf16.mxu0 0
    %1310 = vmatpush1.bf16.msra.mxu0 %v1288
    %1311 = vmatprep.subr.bf16.mxu0 0
    %1312 = vmatpush1.bf16.msra.mxu0 %v1289
    %1313 = vmatprep.subr.bf16.mxu0 0
    %1314 = vmatpush1.bf16.msra.mxu0 %v1290
    %1315 = vmatprep.subr.bf16.mxu0 0
    %1316 = vmatpush1.bf16.msra.mxu0 0
    %1317 = vmatprep.subr.bf16.mxu0 0
    %1318 = vmatpush1.bf16.msra.mxu0 0
    %1319 = vmatprep.subr.bf16.mxu0 0
    %1320 = vmatpush1.bf16.msra.mxu0 0
    %1321 = vmatprep.subr.bf16.mxu0 0
    %1322 = vmatpush1.bf16.msra.mxu0 0
    %1323 = vmatprep.subr.bf16.mxu0 0
    %1324 = vmatpush1.bf16.msra.mxu0 0
    %1325 = vmatprep.subr.bf16.mxu0 0
    %1326 = vmatpush1.bf16.msra.mxu0 0
    %1327 = vmatprep.subr.bf16.mxu0 0
    %1328 = vmatpush1.bf16.msra.mxu0 0
    %1329 = vmatprep.subr.bf16.mxu0 0
    %1330 = vmatpush1.bf16.msra.mxu0 0
    %1331 = vmatprep.mubr.bf16.mxu0 0
    %1332 = vmatmul.mubr.bf16.gmra.mrb[0].mxu0 %v1233
    %v1333 = vpop.f32.mrb[0].mxu0
    %v1334 = vadd.f32 %v1250, %v1333
    %v1335 = vpop.f32.mrb[0].mxu0
    %v1336 = vpop.f32.mrb[0].mxu0
    %v1337 = vpop.f32.mrb[0].mxu0
    %1338 = vdwg.mxu0
    %vm1339 = vcmp.gt.f32.partialorder %v1334, 0.0
    %v1340 = vmin.f32 %v1334, 0.0
    %v1341 = vmul.f32 %v1340, 1.442695
    %v1342 = vpow.pop %v1341
    %v1343 = vsub.f32 %v1342, 1.0
    %v1344 = vsel %vm1339, %v1334, %v1343
    %v1345 = vpack.c.bf16 %v1344, %v1344
    %v1346 = vld [vmem:[#allocation2 + $0x560] sm:$0xf]
    %v1347 = vld [vmem:[#allocation2 + $0x568] sm:$0xf]
    %v1348 = vld [vmem:[#allocation2 + $0x570] sm:$0xf]
    %v1349 = vld [vmem:[#allocation2 + $0x578] sm:$0xf]
    %v1350 = vld [vmem:[#allocation2 + $0x580] sm:$0xf]
    %v1351 = vld [vmem:[#allocation2 + $0x588] sm:$0xf]
    %v1352 = vld [vmem:[#allocation2 + $0x590] sm:$0xf]
    %v1353 = vld [vmem:[#allocation2 + $0x598] sm:$0xf]
    %v1354 = vld [vmem:[#allocation2 + $0x5a0] sm:$0xf]
    %v1355 = vld [vmem:[#allocation2 + $0x5a8] sm:$0xf]
    %v1356 = vld [vmem:[#allocation2 + $0x5b0] sm:$0xf]
    %v1357 = vld [vmem:[#allocation2 + $0x5b8] sm:$0xf]
    %v1358 = vld [vmem:[#allocation2 + $0x5c0] sm:$0xf]
    %v1359 = vld [vmem:[#allocation2 + $0x5c8] sm:$0xf]
    %v1360 = vld [vmem:[#allocation2 + $0x5d0] sm:$0xf]
    %v1361 = vld [vmem:[#allocation2 + $0x5d8] sm:$0xf]
    %v1362 = vld [vmem:[%s3 + $0x6] ss:$0 sm:$0xff]
    %v1379 = vunpack.c.l.b16 %v1346
    %v1380 = vunpack.c.l.b16 %v1347
    %v1381 = vunpack.c.l.b16 %v1348
    %v1382 = vunpack.c.l.b16 %v1349
    %v1383 = vunpack.c.l.b16 %v1350
    %v1384 = vunpack.c.l.b16 %v1351
    %v1385 = vunpack.c.l.b16 %v1352
    %v1386 = vunpack.c.l.b16 %v1353
    %v1387 = vunpack.c.l.b16 %v1354
    %v1388 = vunpack.c.l.b16 %v1355
    %v1389 = vunpack.c.l.b16 %v1356
    %v1390 = vunpack.c.l.b16 %v1357
    %v1391 = vunpack.c.l.b16 %v1358
    %v1392 = vunpack.c.l.b16 %v1359
    %v1393 = vunpack.c.l.b16 %v1360
    %v1394 = vunpack.c.l.b16 %v1361
    %v1395 = vpack.c.b16 %v1380, %v1379
    %v1396 = vpack.c.b16 %v1382, %v1381
    %v1397 = vpack.c.b16 %v1384, %v1383
    %v1398 = vpack.c.b16 %v1386, %v1385
    %v1399 = vpack.c.b16 %v1388, %v1387
    %v1400 = vpack.c.b16 %v1390, %v1389
    %v1401 = vpack.c.b16 %v1392, %v1391
    %v1402 = vpack.c.b16 %v1394, %v1393
    %1411 = vmatprep.subr.bf16.mxu0 0
    %1412 = vmatpush1.bf16.msra.mxu0 %v1395
    %1413 = vmatprep.subr.bf16.mxu0 0
    %1414 = vmatpush1.bf16.msra.mxu0 %v1396
    %1415 = vmatprep.subr.bf16.mxu0 0
    %1416 = vmatpush1.bf16.msra.mxu0 %v1397
    %1417 = vmatprep.subr.bf16.mxu0 0
    %1418 = vmatpush1.bf16.msra.mxu0 %v1398
    %1419 = vmatprep.subr.bf16.mxu0 0
    %1420 = vmatpush1.bf16.msra.mxu0 %v1399
    %1421 = vmatprep.subr.bf16.mxu0 0
    %1422 = vmatpush1.bf16.msra.mxu0 %v1400
    %1423 = vmatprep.subr.bf16.mxu0 0
    %1424 = vmatpush1.bf16.msra.mxu0 %v1401
    %1425 = vmatprep.subr.bf16.mxu0 0
    %1426 = vmatpush1.bf16.msra.mxu0 %v1402
    %1427 = vmatprep.subr.bf16.mxu0 0
    %1428 = vmatpush1.bf16.msra.mxu0 0
    %1429 = vmatprep.subr.bf16.mxu0 0
    %1430 = vmatpush1.bf16.msra.mxu0 0
    %1431 = vmatprep.subr.bf16.mxu0 0
    %1432 = vmatpush1.bf16.msra.mxu0 0
    %1433 = vmatprep.subr.bf16.mxu0 0
    %1434 = vmatpush1.bf16.msra.mxu0 0
    %1435 = vmatprep.subr.bf16.mxu0 0
    %1436 = vmatpush1.bf16.msra.mxu0 0
    %1437 = vmatprep.subr.bf16.mxu0 0
    %1438 = vmatpush1.bf16.msra.mxu0 0
    %1439 = vmatprep.subr.bf16.mxu0 0
    %1440 = vmatpush1.bf16.msra.mxu0 0
    %1441 = vmatprep.subr.bf16.mxu0 0
    %1442 = vmatpush1.bf16.msra.mxu0 0
    %1443 = vmatprep.mubr.bf16.mxu0 0
    %1444 = vmatmul.mubr.bf16.gmra.mrb[0].mxu0 %v1345
    %v1445 = vpop.f32.mrb[0].mxu0
    %v1446 = vadd.f32 %v1362, %v1445
    %v1447 = vpop.f32.mrb[0].mxu0
    %v1448 = vpop.f32.mrb[0].mxu0
    %v1449 = vpop.f32.mrb[0].mxu0
    %1450 = vdwg.mxu0
    %1451 = vst [vmem:[%s4] sm:$0xff] %v1446
    // Predicated region
    $region22: #{actor_critic_forward.1} parent=1 // pred_check
      _
    $region23: #{actor_critic_forward.1} parent=1 // pred_check_branch
      %1453 = sbr.rel (0) target = $region25
    $region24: #{actor_critic_forward.1} parent=1 // pred_region
      _
    $region25: #{actor_critic_forward.1} parent=1 // pred_fallthru
      _
    // Predicated region
    $region26: #{actor_critic_forward.1} parent=1 // pred_check
      _
    $region27: #{actor_critic_forward.1} parent=1 // pred_check_branch
      %1455 = sbr.rel (0) target = $region29
    $region28: #{actor_critic_forward.1} parent=1 // pred_region
      _
    $region29: #{actor_critic_forward.1} parent=1 // pred_fallthru
      _
    %1456 = vsyncpa [#allocation3], 1

</llo_original>
